<compile_context>
chip_gen: v6e
topology: v6e:2x2x1
jax: 0.10.0
libtpu: 0.0.40
codegen_flags: <defaults>
</compile_context>

<pallas_src>
import functools

import numpy as np
import jax
import jax.numpy as jnp
from jax import lax
from jax.experimental import pallas as pl
from jax.experimental.pallas import tpu as pltpu


def _query_and_group_kernel(xyz_t_ref, rhs_ref, new_xyz_ref,
                            point_batch_ref, center_batch_ref, center_start_ref,
                            out_ref, idx_ref, *, radius, nsample):
    TM = new_xyz_ref.shape[0]          # centers in this tile
    N = xyz_t_ref.shape[1]             # total points
    D = rhs_ref.shape[1]               # 3 + C

    xyz_t = xyz_t_ref[...]             # (3, N)  coords on sublanes, points on lanes
    rhs = rhs_ref[...]                 # (N, D)  fused [xyz | features] gather RHS
    new_xyz = new_xyz_ref[...]         # (TM, 3)
    pb = point_batch_ref[...]          # (1, N)  batch id of each point
    cb = center_batch_ref[...]         # (TM, 1) batch id of each center (-1 = padding)
    cs = center_start_ref[...]         # (TM, 1) xyz segment start of the center's batch

    # pairwise squared distances (TM, N); same accumulation order as the
    # reference so the radius comparison is bit-identical.
    d2 = jnp.zeros((TM, N), jnp.float32)
    for d in range(3):
        diff = new_xyz[:, d:d + 1] - xyz_t[d:d + 1, :]      # (TM,1) - (1,N) -> (TM,N)
        d2 = d2 + diff * diff

    same_batch = (cb == pb)                                  # (TM, N)
    mask = same_batch & (d2 < jnp.float32(radius * radius))  # (TM, N)

    k_iota = lax.broadcasted_iota(jnp.int32, (TM, N), 1)     # global point index
    local_k = (k_iota - cs).astype(jnp.float32)              # index within batch segment

    BIG = jnp.float32(1e9)
    first = jnp.min(jnp.where(mask, local_k, BIG), axis=-1, keepdims=True)  # (TM, 1)
    empty = first >= BIG * 0.5                                              # (TM, 1)

    # recentering slab: new_xyz in the first 3 columns, zeros for the C feature
    # columns; computed once per tile.
    center_pad = jnp.concatenate(
        [new_xyz, jnp.zeros((TM, D - 3), jnp.float32)], axis=1)             # (TM, D)

    # running-min selection: sample s is the s-th smallest in-ball point index
    # (== first nsample matches in point order, as in the CUDA kernel).
    prev = jnp.full((TM, 1), -1.0, jnp.float32)
    idx_cols = []
    for s in range(nsample):
        cand = jnp.where(mask & (local_k > prev), local_k, BIG)
        sel = jnp.min(cand, axis=-1, keepdims=True)          # (TM, 1)
        have = sel < BIG * 0.5
        idx_f = jnp.where(have, sel, first)                  # repeat first match
        idx_f = jnp.where(empty, 0.0, idx_f)                 # empty balls -> 0
        idx_i = idx_f.astype(jnp.int32)                      # local index (TM, 1)
        prev = jnp.where(have, sel, prev)

        g = idx_i + cs                                       # global index (TM, 1)
        onehot = (k_iota == g).astype(jnp.float32)           # (TM, N)
        col = jnp.dot(onehot, rhs, preferred_element_type=jnp.float32)  # (TM, D)
        col = jnp.where(empty, 0.0, col - center_pad)        # recenter xyz, zero empty

        out_ref[s, :, :] = col                               # sample-major slab
        idx_cols.append(idx_i)

    idx_ref[...] = jnp.concatenate(idx_cols, axis=-1)        # (TM, nsample)


def query_and_group(xyz, features, new_xyz, xyz_batch_cnt, new_xyz_batch_cnt,
                    *, radius, nsample, tile_m=64):
    """QueryAndGroup forward.

    Args:
      xyz:      (N, 3) f32
      features: (N, C) f32
      new_xyz:  (M, 3) f32
      xyz_batch_cnt / new_xyz_batch_cnt: numpy int arrays, per-batch counts.

    Returns:
      new_features: (M, 3+C, nsample) f32
      idx:          (M, nsample) i32  (local-in-batch indices, 0 for empty balls)
    """
    N, C = features.shape
    M = new_xyz.shape[0]
    D = 3 + C
    B = len(xyz_batch_cnt)

    # ---- integer bookkeeping (plain numpy glue) ----
    xyz_batch_cnt = np.asarray(xyz_batch_cnt, np.int64)
    new_xyz_batch_cnt = np.asarray(new_xyz_batch_cnt, np.int64)
    point_batch = np.repeat(np.arange(B), xyz_batch_cnt).astype(np.int32)        # (N,)
    center_batch = np.repeat(np.arange(B), new_xyz_batch_cnt).astype(np.int32)   # (M,)
    xyz_start = np.concatenate([[0], np.cumsum(xyz_batch_cnt)])[:B].astype(np.int32)
    center_start = xyz_start[center_batch].astype(np.int32)                      # (M,)

    # ---- pad centers to a multiple of tile_m (padding centers match nothing) ----
    tile_m = max(8, int(tile_m))
    m_pad = -(-M // tile_m) * tile_m
    pad = m_pad - M
    if pad:
        new_xyz_p = jnp.concatenate(
            [new_xyz, jnp.zeros((pad, 3), new_xyz.dtype)], axis=0)
        center_batch_p = np.concatenate([center_batch, -np.ones(pad, np.int32)])
        center_start_p = np.concatenate([center_start, np.zeros(pad, np.int32)])
    else:
        new_xyz_p = new_xyz
        center_batch_p = center_batch
        center_start_p = center_start

    # ---- kernel operands ----
    xyz_t = jnp.transpose(xyz)                                   # (3, N)
    rhs = jnp.concatenate([xyz, features], axis=1)               # (N, 3+C)
    pb2 = jnp.asarray(point_batch.reshape(1, N))
    cb2 = jnp.asarray(center_batch_p.reshape(m_pad, 1))
    cs2 = jnp.asarray(center_start_p.reshape(m_pad, 1))

    kernel = functools.partial(_query_and_group_kernel,
                               radius=float(radius), nsample=int(nsample))

    out_slab, idx = pl.pallas_call(
        kernel,
        out_shape=(jax.ShapeDtypeStruct((nsample, m_pad, D), jnp.float32),
                   jax.ShapeDtypeStruct((m_pad, nsample), jnp.int32)),
        grid=(m_pad // tile_m,),
        in_specs=[
            pl.BlockSpec((3, N), lambda i: (0, 0)),          # xyz_t   (resident)
            pl.BlockSpec((N, D), lambda i: (0, 0)),          # rhs     (resident)
            pl.BlockSpec((tile_m, 3), lambda i: (i, 0)),     # new_xyz tile
            pl.BlockSpec((1, N), lambda i: (0, 0)),          # point batch ids (resident)
            pl.BlockSpec((tile_m, 1), lambda i: (i, 0)),     # center batch ids
            pl.BlockSpec((tile_m, 1), lambda i: (i, 0)),     # center segment starts
        ],
        out_specs=(pl.BlockSpec((nsample, tile_m, D), lambda i: (0, i, 0)),
                   pl.BlockSpec((tile_m, nsample), lambda i: (i, 0))),
        compiler_params=pltpu.CompilerParams(
            dimension_semantics=("parallel",)),
    )(xyz_t, rhs, new_xyz_p, pb2, cb2, cs2)

    # restore PyTorch layout: (nsample, M, 3+C) -> (M, 3+C, nsample)
    new_features = jnp.transpose(out_slab[:, :M, :], (1, 2, 0))
    return new_features, idx[:M]


def _ref_forward(xyz, xyz_cnt, new_xyz, new_xyz_cnt, features, radius, nsample):
    """Pure-numpy reference reproducing the CUDA kernels' semantics."""
    xyz = xyz.astype(np.float32)
    new_xyz = new_xyz.astype(np.float32)
    features = features.astype(np.float32)
    starts = np.concatenate([[0], np.cumsum(xyz_cnt)]).astype(np.int64)
    cstarts = np.concatenate([[0], np.cumsum(new_xyz_cnt)]).astype(np.int64)
    M = new_xyz.shape[0]
    C = features.shape[1]
    idx = np.zeros((M, nsample), np.int32)
    empty = np.zeros((M,), bool)
    r2 = np.float32(radius) * np.float32(radius)
    for b in range(len(xyz_cnt)):
        for m in range(cstarts[b], cstarts[b + 1]):
            cnt = 0
            for k in range(xyz_cnt[b]):
                diff = new_xyz[m] - xyz[starts[b] + k]
                d2 = np.float32(diff[0] * diff[0] + diff[1] * diff[1] + diff[2] * diff[2])
                if d2 < r2:
                    if cnt == 0:
                        idx[m, :] = k
                    idx[m, cnt] = k
                    cnt += 1
                    if cnt >= nsample:
                        break
            if cnt == 0:
                empty[m] = True
                idx[m, :] = 0
    out = np.zeros((M, 3 + C, nsample), np.float32)
    for b in range(len(xyz_cnt)):
        for m in range(cstarts[b], cstarts[b + 1]):
            for s in range(nsample):
                g = starts[b] + idx[m, s]
                if empty[m]:
                    continue
                out[m, :3, s] = xyz[g] - new_xyz[m]
                out[m, 3:, s] = features[g]
    return out, idx


if __name__ == "__main__":
    radius = 1.2
    nsample = 8
    C = 4

    xyz_batch_cnt = np.array([12, 20], np.int32)       # N = 32
    new_xyz_batch_cnt = np.array([6, 10], np.int32)    # M = 16
    N = int(xyz_batch_cnt.sum())
    M = int(new_xyz_batch_cnt.sum())

    key = jax.random.PRNGKey(0)
    k1, k2, k3 = jax.random.split(key, 3)
    xyz = jax.random.uniform(k1, (N, 3), jnp.float32, 0.0, 2.0)
    new_xyz = jax.random.uniform(k2, (M, 3), jnp.float32, 0.0, 2.0)
    features = jax.random.normal(k3, (N, C), jnp.float32)

    new_features, idx = query_and_group(
        xyz, features, new_xyz, xyz_batch_cnt, new_xyz_batch_cnt,
        radius=radius, nsample=nsample, tile_m=8)   # tile_m=8 -> 2 grid steps
    new_features = jax.block_until_ready(new_features)
    idx = jax.block_until_ready(idx)

    ref_feats, ref_idx = _ref_forward(
        np.asarray(xyz), xyz_batch_cnt, np.asarray(new_xyz),
        new_xyz_batch_cnt, np.asarray(features), radius, nsample)

    assert np.array_equal(np.asarray(idx), ref_idx), "idx mismatch"
    np.testing.assert_allclose(np.asarray(new_features), ref_feats,
                               rtol=1e-4, atol=1e-4)

    print("KERNEL_OK")
</pallas_src>

<mosaic_0001>
module attributes {stable_mosaic.version = 11 : i64} {
  func.func @_query_and_group_kernel(%arg0: i32, %arg1: memref<3x32xf32, #tpu.memory_space<vmem>>, %arg2: memref<32x7xf32, #tpu.memory_space<vmem>>, %arg3: memref<8x3xf32, #tpu.memory_space<vmem>>, %arg4: memref<1x32xi32, #tpu.memory_space<vmem>>, %arg5: memref<8x1xi32, #tpu.memory_space<vmem>>, %arg6: memref<8x1xi32, #tpu.memory_space<vmem>>, %arg7: memref<8x8x7xf32, #tpu.memory_space<vmem>>, %arg8: memref<8x8xi32, #tpu.memory_space<vmem>>) attributes {dimension_semantics = [#tpu.dimension_semantics<parallel>], iteration_bounds = array<i64: 2>, scalar_prefetch = 0 : i64, scratch_operands = 0 : i64, tpu.core_type = #tpu.core_type<tc>, window_params = [{pipeline_mode = #tpu.pipeline_mode<synchronous>, transform_indices = @transform_0, window_bounds = array<i64: 3, 32>}, {pipeline_mode = #tpu.pipeline_mode<synchronous>, transform_indices = @transform_1, window_bounds = array<i64: 32, 7>}, {transform_indices = @transform_2, window_bounds = array<i64: 8, 3>}, {pipeline_mode = #tpu.pipeline_mode<synchronous>, transform_indices = @transform_3, window_bounds = array<i64: 1, 32>}, {transform_indices = @transform_4, window_bounds = array<i64: 8, 1>}, {transform_indices = @transform_5, window_bounds = array<i64: 8, 1>}, {transform_indices = @transform_6, window_bounds = array<i64: 8, 8, 7>}, {transform_indices = @transform_7, window_bounds = array<i64: 8, 8>}]} {
    %c0 = arith.constant 0 : index
    %c0_0 = arith.constant 0 : index
    %0 = vector.load %arg1[%c0, %c0_0] : memref<3x32xf32, #tpu.memory_space<vmem>>, vector<3x32xf32>
    %c0_1 = arith.constant 0 : index
    %c0_2 = arith.constant 0 : index
    %1 = vector.load %arg2[%c0_1, %c0_2] : memref<32x7xf32, #tpu.memory_space<vmem>>, vector<32x7xf32>
    %c0_3 = arith.constant 0 : index
    %c0_4 = arith.constant 0 : index
    %2 = vector.load %arg3[%c0_3, %c0_4] : memref<8x3xf32, #tpu.memory_space<vmem>>, vector<8x3xf32>
    %c0_5 = arith.constant 0 : index
    %c0_6 = arith.constant 0 : index
    %3 = vector.load %arg4[%c0_5, %c0_6] : memref<1x32xi32, #tpu.memory_space<vmem>>, vector<1x32xi32>
    %c0_7 = arith.constant 0 : index
    %c0_8 = arith.constant 0 : index
    %4 = vector.load %arg5[%c0_7, %c0_8] : memref<8x1xi32, #tpu.memory_space<vmem>>, vector<8x1xi32>
    %c0_9 = arith.constant 0 : index
    %c0_10 = arith.constant 0 : index
    %5 = vector.load %arg6[%c0_9, %c0_10] : memref<8x1xi32, #tpu.memory_space<vmem>>, vector<8x1xi32>
    %cst = arith.constant 0.000000e+00 : f32
    %6 = vector.broadcast %cst : f32 to vector<8x32xf32>
    %7 = vector.extract_strided_slice %2 {offsets = [0, 0], sizes = [8, 1], strides = [1, 1]} : vector<8x3xf32> to vector<8x1xf32>
    %8 = vector.extract_strided_slice %0 {offsets = [0, 0], sizes = [1, 32], strides = [1, 1]} : vector<3x32xf32> to vector<1x32xf32>
    %9 = vector.broadcast %7 : vector<8x1xf32> to vector<8x32xf32>
    %10 = vector.broadcast %8 : vector<1x32xf32> to vector<8x32xf32>
    %11 = arith.subf %9, %10 : vector<8x32xf32>
    %12 = arith.mulf %11, %11 : vector<8x32xf32>
    %13 = arith.addf %6, %12 : vector<8x32xf32>
    %14 = vector.extract_strided_slice %2 {offsets = [0, 1], sizes = [8, 1], strides = [1, 1]} : vector<8x3xf32> to vector<8x1xf32>
    %15 = vector.extract_strided_slice %0 {offsets = [1, 0], sizes = [1, 32], strides = [1, 1]} : vector<3x32xf32> to vector<1x32xf32>
    %16 = vector.broadcast %14 : vector<8x1xf32> to vector<8x32xf32>
    %17 = vector.broadcast %15 : vector<1x32xf32> to vector<8x32xf32>
    %18 = arith.subf %16, %17 : vector<8x32xf32>
    %19 = arith.mulf %18, %18 : vector<8x32xf32>
    %20 = arith.addf %13, %19 : vector<8x32xf32>
    %21 = vector.extract_strided_slice %2 {offsets = [0, 2], sizes = [8, 1], strides = [1, 1]} : vector<8x3xf32> to vector<8x1xf32>
    %22 = vector.extract_strided_slice %0 {offsets = [2, 0], sizes = [1, 32], strides = [1, 1]} : vector<3x32xf32> to vector<1x32xf32>
    %23 = vector.broadcast %21 : vector<8x1xf32> to vector<8x32xf32>
    %24 = vector.broadcast %22 : vector<1x32xf32> to vector<8x32xf32>
    %25 = arith.subf %23, %24 : vector<8x32xf32>
    %26 = arith.mulf %25, %25 : vector<8x32xf32>
    %27 = arith.addf %20, %26 : vector<8x32xf32>
    %28 = vector.broadcast %4 : vector<8x1xi32> to vector<8x32xi32>
    %29 = vector.broadcast %3 : vector<1x32xi32> to vector<8x32xi32>
    %30 = arith.cmpi eq, %28, %29 : vector<8x32xi32>
    %cst_11 = arith.constant 1.440000e+00 : f32
    %31 = vector.broadcast %cst_11 : f32 to vector<8x32xf32>
    %32 = arith.cmpf olt, %27, %31 : vector<8x32xf32>
    %33 = arith.andi %30, %32 : vector<8x32xi1>
    %34 = tpu.iota {dimensions = array<i32: 1>} : vector<8x32xi32>
    %35 = vector.broadcast %5 : vector<8x1xi32> to vector<8x32xi32>
    %36 = arith.subi %34, %35 : vector<8x32xi32>
    %37 = arith.sitofp %36 : vector<8x32xi32> to vector<8x32xf32>
    %cst_12 = arith.constant 1.000000e+09 : f32
    %38 = vector.broadcast %cst_12 : f32 to vector<8x32xf32>
    %39 = arith.select %33, %37, %38 : vector<8x32xi1>, vector<8x32xf32>
    %cst_13 = arith.constant dense<0x7F800000> : vector<8xf32>
    %40 = vector.multi_reduction <minimumf>, %39, %cst_13 [1] : vector<8x32xf32> to vector<8xf32>
    %41 = vector.shape_cast %40 : vector<8xf32> to vector<8x1xf32>
    %cst_14 = arith.constant 1.000000e+09 : f32
    %cst_15 = arith.constant 5.000000e-01 : f32
    %42 = arith.mulf %cst_14, %cst_15 : f32
    %43 = vector.broadcast %42 : f32 to vector<8x1xf32>
    %44 = arith.cmpf oge, %41, %43 : vector<8x1xf32>
    %cst_16 = arith.constant 0.000000e+00 : f32
    %45 = vector.broadcast %cst_16 : f32 to vector<8x4xf32>
    %46 = tpu.concatenate %2, %45 in 1 : vector<8x3xf32>, vector<8x4xf32> -> vector<8x7xf32>
    %cst_17 = arith.constant -1.000000e+00 : f32
    %47 = vector.broadcast %cst_17 : f32 to vector<8x1xf32>
    %48 = vector.broadcast %47 : vector<8x1xf32> to vector<8x32xf32>
    %49 = arith.cmpf ogt, %37, %48 : vector<8x32xf32>
    %50 = arith.andi %33, %49 : vector<8x32xi1>
    %cst_18 = arith.constant 1.000000e+09 : f32
    %51 = vector.broadcast %cst_18 : f32 to vector<8x32xf32>
    %52 = arith.select %50, %37, %51 : vector<8x32xi1>, vector<8x32xf32>
    %cst_19 = arith.constant dense<0x7F800000> : vector<8xf32>
    %53 = vector.multi_reduction <minimumf>, %52, %cst_19 [1] : vector<8x32xf32> to vector<8xf32>
    %54 = vector.shape_cast %53 : vector<8xf32> to vector<8x1xf32>
    %cst_20 = arith.constant 1.000000e+09 : f32
    %cst_21 = arith.constant 5.000000e-01 : f32
    %55 = arith.mulf %cst_20, %cst_21 : f32
    %56 = vector.broadcast %55 : f32 to vector<8x1xf32>
    %57 = arith.cmpf olt, %54, %56 : vector<8x1xf32>
    %58 = arith.select %57, %54, %41 : vector<8x1xi1>, vector<8x1xf32>
    %cst_22 = arith.constant 0.000000e+00 : f32
    %59 = vector.broadcast %cst_22 : f32 to vector<8x1xf32>
    %60 = arith.select %44, %59, %58 : vector<8x1xi1>, vector<8x1xf32>
    %61 = arith.fptosi %60 : vector<8x1xf32> to vector<8x1xi32>
    %62 = arith.select %57, %54, %47 : vector<8x1xi1>, vector<8x1xf32>
    %63 = arith.addi %61, %5 : vector<8x1xi32>
    %64 = vector.broadcast %63 : vector<8x1xi32> to vector<8x32xi32>
    %65 = arith.cmpi eq, %34, %64 : vector<8x32xi32>
    %66 = arith.extui %65 : vector<8x32xi1> to vector<8x32xi32>
    %67 = arith.sitofp %66 : vector<8x32xi32> to vector<8x32xf32>
    %cst_23 = arith.constant dense<0.000000e+00> : vector<8x7xf32>
    %68 = tpu.matmul %67, %1, %cst_23 {dimension_numbers = #tpu.dot_dimension_numbers<[1], [0], [0], [1], [0, 0, 1, 1], [], []>} : vector<8x32xf32>, vector<32x7xf32>, vector<8x7xf32> -> vector<8x7xf32>
    %69 = arith.subf %68, %46 : vector<8x7xf32>
    %cst_24 = arith.constant 0.000000e+00 : f32
    %70 = vector.shape_cast %44 : vector<8x1xi1> to vector<8x1xi1>
    %71 = vector.broadcast %70 : vector<8x1xi1> to vector<8x7xi1>
    %72 = vector.broadcast %cst_24 : f32 to vector<8x7xf32>
    %73 = arith.select %71, %72, %69 : vector<8x7xi1>, vector<8x7xf32>
    %c0_25 = arith.constant 0 : index
    %c0_26 = arith.constant 0 : index
    %c0_27 = arith.constant 0 : index
    %74 = vector.load %arg7[%c0_25, %c0_26, %c0_27] : memref<8x8x7xf32, #tpu.memory_space<vmem>>, vector<1x8x7xf32>
    %75 = vector.shape_cast %74 : vector<1x8x7xf32> to vector<8x7xf32>
    %76 = vector.shape_cast %73 : vector<8x7xf32> to vector<1x8x7xf32>
    tpu.vector_store %arg7[%c0_25, %c0_26, %c0_27], %76 {strides = array<i32>} : memref<8x8x7xf32, #tpu.memory_space<vmem>>, vector<1x8x7xf32>,
    %77 = vector.broadcast %62 : vector<8x1xf32> to vector<8x32xf32>
    %78 = arith.cmpf ogt, %37, %77 : vector<8x32xf32>
    %79 = arith.andi %33, %78 : vector<8x32xi1>
    %cst_28 = arith.constant 1.000000e+09 : f32
    %80 = vector.broadcast %cst_28 : f32 to vector<8x32xf32>
    %81 = arith.select %79, %37, %80 : vector<8x32xi1>, vector<8x32xf32>
    %cst_29 = arith.constant dense<0x7F800000> : vector<8xf32>
    %82 = vector.multi_reduction <minimumf>, %81, %cst_29 [1] : vector<8x32xf32> to vector<8xf32>
    %83 = vector.shape_cast %82 : vector<8xf32> to vector<8x1xf32>
    %cst_30 = arith.constant 1.000000e+09 : f32
    %cst_31 = arith.constant 5.000000e-01 : f32
    %84 = arith.mulf %cst_30, %cst_31 : f32
    %85 = vector.broadcast %84 : f32 to vector<8x1xf32>
    %86 = arith.cmpf olt, %83, %85 : vector<8x1xf32>
    %87 = arith.select %86, %83, %41 : vector<8x1xi1>, vector<8x1xf32>
    %cst_32 = arith.constant 0.000000e+00 : f32
    %88 = vector.broadcast %cst_32 : f32 to vector<8x1xf32>
    %89 = arith.select %44, %88, %87 : vector<8x1xi1>, vector<8x1xf32>
    %90 = arith.fptosi %89 : vector<8x1xf32> to vector<8x1xi32>
    %91 = arith.select %86, %83, %62 : vector<8x1xi1>, vector<8x1xf32>
    %92 = arith.addi %90, %5 : vector<8x1xi32>
    %93 = vector.broadcast %92 : vector<8x1xi32> to vector<8x32xi32>
    %94 = arith.cmpi eq, %34, %93 : vector<8x32xi32>
    %95 = arith.extui %94 : vector<8x32xi1> to vector<8x32xi32>
    %96 = arith.sitofp %95 : vector<8x32xi32> to vector<8x32xf32>
    %cst_33 = arith.constant dense<0.000000e+00> : vector<8x7xf32>
    %97 = tpu.matmul %96, %1, %cst_33 {dimension_numbers = #tpu.dot_dimension_numbers<[1], [0], [0], [1], [0, 0, 1, 1], [], []>} : vector<8x32xf32>, vector<32x7xf32>, vector<8x7xf32> -> vector<8x7xf32>
    %98 = arith.subf %97, %46 : vector<8x7xf32>
    %cst_34 = arith.constant 0.000000e+00 : f32
    %99 = vector.shape_cast %44 : vector<8x1xi1> to vector<8x1xi1>
    %100 = vector.broadcast %99 : vector<8x1xi1> to vector<8x7xi1>
    %101 = vector.broadcast %cst_34 : f32 to vector<8x7xf32>
    %102 = arith.select %100, %101, %98 : vector<8x7xi1>, vector<8x7xf32>
    %c1 = arith.constant 1 : index
    %c0_35 = arith.constant 0 : index
    %c0_36 = arith.constant 0 : index
    %103 = vector.load %arg7[%c1, %c0_35, %c0_36] : memref<8x8x7xf32, #tpu.memory_space<vmem>>, vector<1x8x7xf32>
    %104 = vector.shape_cast %103 : vector<1x8x7xf32> to vector<8x7xf32>
    %105 = vector.shape_cast %102 : vector<8x7xf32> to vector<1x8x7xf32>
    tpu.vector_store %arg7[%c1, %c0_35, %c0_36], %105 {strides = array<i32>} : memref<8x8x7xf32, #tpu.memory_space<vmem>>, vector<1x8x7xf32>,
    %106 = vector.broadcast %91 : vector<8x1xf32> to vector<8x32xf32>
    %107 = arith.cmpf ogt, %37, %106 : vector<8x32xf32>
    %108 = arith.andi %33, %107 : vector<8x32xi1>
    %cst_37 = arith.constant 1.000000e+09 : f32
    %109 = vector.broadcast %cst_37 : f32 to vector<8x32xf32>
    %110 = arith.select %108, %37, %109 : vector<8x32xi1>, vector<8x32xf32>
    %cst_38 = arith.constant dense<0x7F800000> : vector<8xf32>
    %111 = vector.multi_reduction <minimumf>, %110, %cst_38 [1] : vector<8x32xf32> to vector<8xf32>
    %112 = vector.shape_cast %111 : vector<8xf32> to vector<8x1xf32>
    %cst_39 = arith.constant 1.000000e+09 : f32
    %cst_40 = arith.constant 5.000000e-01 : f32
    %113 = arith.mulf %cst_39, %cst_40 : f32
    %114 = vector.broadcast %113 : f32 to vector<8x1xf32>
    %115 = arith.cmpf olt, %112, %114 : vector<8x1xf32>
    %116 = arith.select %115, %112, %41 : vector<8x1xi1>, vector<8x1xf32>
    %cst_41 = arith.constant 0.000000e+00 : f32
    %117 = vector.broadcast %cst_41 : f32 to vector<8x1xf32>
    %118 = arith.select %44, %117, %116 : vector<8x1xi1>, vector<8x1xf32>
    %119 = arith.fptosi %118 : vector<8x1xf32> to vector<8x1xi32>
    %120 = arith.select %115, %112, %91 : vector<8x1xi1>, vector<8x1xf32>
    %121 = arith.addi %119, %5 : vector<8x1xi32>
    %122 = vector.broadcast %121 : vector<8x1xi32> to vector<8x32xi32>
    %123 = arith.cmpi eq, %34, %122 : vector<8x32xi32>
    %124 = arith.extui %123 : vector<8x32xi1> to vector<8x32xi32>
    %125 = arith.sitofp %124 : vector<8x32xi32> to vector<8x32xf32>
    %cst_42 = arith.constant dense<0.000000e+00> : vector<8x7xf32>
    %126 = tpu.matmul %125, %1, %cst_42 {dimension_numbers = #tpu.dot_dimension_numbers<[1], [0], [0], [1], [0, 0, 1, 1], [], []>} : vector<8x32xf32>, vector<32x7xf32>, vector<8x7xf32> -> vector<8x7xf32>
    %127 = arith.subf %126, %46 : vector<8x7xf32>
    %cst_43 = arith.constant 0.000000e+00 : f32
    %128 = vector.shape_cast %44 : vector<8x1xi1> to vector<8x1xi1>
    %129 = vector.broadcast %128 : vector<8x1xi1> to vector<8x7xi1>
    %130 = vector.broadcast %cst_43 : f32 to vector<8x7xf32>
    %131 = arith.select %129, %130, %127 : vector<8x7xi1>, vector<8x7xf32>
    %c2 = arith.constant 2 : index
    %c0_44 = arith.constant 0 : index
    %c0_45 = arith.constant 0 : index
    %132 = vector.load %arg7[%c2, %c0_44, %c0_45] : memref<8x8x7xf32, #tpu.memory_space<vmem>>, vector<1x8x7xf32>
    %133 = vector.shape_cast %132 : vector<1x8x7xf32> to vector<8x7xf32>
    %134 = vector.shape_cast %131 : vector<8x7xf32> to vector<1x8x7xf32>
    tpu.vector_store %arg7[%c2, %c0_44, %c0_45], %134 {strides = array<i32>} : memref<8x8x7xf32, #tpu.memory_space<vmem>>, vector<1x8x7xf32>,
    %135 = vector.broadcast %120 : vector<8x1xf32> to vector<8x32xf32>
    %136 = arith.cmpf ogt, %37, %135 : vector<8x32xf32>
    %137 = arith.andi %33, %136 : vector<8x32xi1>
    %cst_46 = arith.constant 1.000000e+09 : f32
    %138 = vector.broadcast %cst_46 : f32 to vector<8x32xf32>
    %139 = arith.select %137, %37, %138 : vector<8x32xi1>, vector<8x32xf32>
    %cst_47 = arith.constant dense<0x7F800000> : vector<8xf32>
    %140 = vector.multi_reduction <minimumf>, %139, %cst_47 [1] : vector<8x32xf32> to vector<8xf32>
    %141 = vector.shape_cast %140 : vector<8xf32> to vector<8x1xf32>
    %cst_48 = arith.constant 1.000000e+09 : f32
    %cst_49 = arith.constant 5.000000e-01 : f32
    %142 = arith.mulf %cst_48, %cst_49 : f32
    %143 = vector.broadcast %142 : f32 to vector<8x1xf32>
    %144 = arith.cmpf olt, %141, %143 : vector<8x1xf32>
    %145 = arith.select %144, %141, %41 : vector<8x1xi1>, vector<8x1xf32>
    %cst_50 = arith.constant 0.000000e+00 : f32
    %146 = vector.broadcast %cst_50 : f32 to vector<8x1xf32>
    %147 = arith.select %44, %146, %145 : vector<8x1xi1>, vector<8x1xf32>
    %148 = arith.fptosi %147 : vector<8x1xf32> to vector<8x1xi32>
    %149 = arith.select %144, %141, %120 : vector<8x1xi1>, vector<8x1xf32>
    %150 = arith.addi %148, %5 : vector<8x1xi32>
    %151 = vector.broadcast %150 : vector<8x1xi32> to vector<8x32xi32>
    %152 = arith.cmpi eq, %34, %151 : vector<8x32xi32>
    %153 = arith.extui %152 : vector<8x32xi1> to vector<8x32xi32>
    %154 = arith.sitofp %153 : vector<8x32xi32> to vector<8x32xf32>
    %cst_51 = arith.constant dense<0.000000e+00> : vector<8x7xf32>
    %155 = tpu.matmul %154, %1, %cst_51 {dimension_numbers = #tpu.dot_dimension_numbers<[1], [0], [0], [1], [0, 0, 1, 1], [], []>} : vector<8x32xf32>, vector<32x7xf32>, vector<8x7xf32> -> vector<8x7xf32>
    %156 = arith.subf %155, %46 : vector<8x7xf32>
    %cst_52 = arith.constant 0.000000e+00 : f32
    %157 = vector.shape_cast %44 : vector<8x1xi1> to vector<8x1xi1>
    %158 = vector.broadcast %157 : vector<8x1xi1> to vector<8x7xi1>
    %159 = vector.broadcast %cst_52 : f32 to vector<8x7xf32>
    %160 = arith.select %158, %159, %156 : vector<8x7xi1>, vector<8x7xf32>
    %c3 = arith.constant 3 : index
    %c0_53 = arith.constant 0 : index
    %c0_54 = arith.constant 0 : index
    %161 = vector.load %arg7[%c3, %c0_53, %c0_54] : memref<8x8x7xf32, #tpu.memory_space<vmem>>, vector<1x8x7xf32>
    %162 = vector.shape_cast %161 : vector<1x8x7xf32> to vector<8x7xf32>
    %163 = vector.shape_cast %160 : vector<8x7xf32> to vector<1x8x7xf32>
    tpu.vector_store %arg7[%c3, %c0_53, %c0_54], %163 {strides = array<i32>} : memref<8x8x7xf32, #tpu.memory_space<vmem>>, vector<1x8x7xf32>,
    %164 = vector.broadcast %149 : vector<8x1xf32> to vector<8x32xf32>
    %165 = arith.cmpf ogt, %37, %164 : vector<8x32xf32>
    %166 = arith.andi %33, %165 : vector<8x32xi1>
    %cst_55 = arith.constant 1.000000e+09 : f32
    %167 = vector.broadcast %cst_55 : f32 to vector<8x32xf32>
    %168 = arith.select %166, %37, %167 : vector<8x32xi1>, vector<8x32xf32>
    %cst_56 = arith.constant dense<0x7F800000> : vector<8xf32>
    %169 = vector.multi_reduction <minimumf>, %168, %cst_56 [1] : vector<8x32xf32> to vector<8xf32>
    %170 = vector.shape_cast %169 : vector<8xf32> to vector<8x1xf32>
    %cst_57 = arith.constant 1.000000e+09 : f32
    %cst_58 = arith.constant 5.000000e-01 : f32
    %171 = arith.mulf %cst_57, %cst_58 : f32
    %172 = vector.broadcast %171 : f32 to vector<8x1xf32>
    %173 = arith.cmpf olt, %170, %172 : vector<8x1xf32>
    %174 = arith.select %173, %170, %41 : vector<8x1xi1>, vector<8x1xf32>
    %cst_59 = arith.constant 0.000000e+00 : f32
    %175 = vector.broadcast %cst_59 : f32 to vector<8x1xf32>
    %176 = arith.select %44, %175, %174 : vector<8x1xi1>, vector<8x1xf32>
    %177 = arith.fptosi %176 : vector<8x1xf32> to vector<8x1xi32>
    %178 = arith.select %173, %170, %149 : vector<8x1xi1>, vector<8x1xf32>
    %179 = arith.addi %177, %5 : vector<8x1xi32>
    %180 = vector.broadcast %179 : vector<8x1xi32> to vector<8x32xi32>
    %181 = arith.cmpi eq, %34, %180 : vector<8x32xi32>
    %182 = arith.extui %181 : vector<8x32xi1> to vector<8x32xi32>
    %183 = arith.sitofp %182 : vector<8x32xi32> to vector<8x32xf32>
    %cst_60 = arith.constant dense<0.000000e+00> : vector<8x7xf32>
    %184 = tpu.matmul %183, %1, %cst_60 {dimension_numbers = #tpu.dot_dimension_numbers<[1], [0], [0], [1], [0, 0, 1, 1], [], []>} : vector<8x32xf32>, vector<32x7xf32>, vector<8x7xf32> -> vector<8x7xf32>
    %185 = arith.subf %184, %46 : vector<8x7xf32>
    %cst_61 = arith.constant 0.000000e+00 : f32
    %186 = vector.shape_cast %44 : vector<8x1xi1> to vector<8x1xi1>
    %187 = vector.broadcast %186 : vector<8x1xi1> to vector<8x7xi1>
    %188 = vector.broadcast %cst_61 : f32 to vector<8x7xf32>
    %189 = arith.select %187, %188, %185 : vector<8x7xi1>, vector<8x7xf32>
    %c4 = arith.constant 4 : index
    %c0_62 = arith.constant 0 : index
    %c0_63 = arith.constant 0 : index
    %190 = vector.load %arg7[%c4, %c0_62, %c0_63] : memref<8x8x7xf32, #tpu.memory_space<vmem>>, vector<1x8x7xf32>
    %191 = vector.shape_cast %190 : vector<1x8x7xf32> to vector<8x7xf32>
    %192 = vector.shape_cast %189 : vector<8x7xf32> to vector<1x8x7xf32>
    tpu.vector_store %arg7[%c4, %c0_62, %c0_63], %192 {strides = array<i32>} : memref<8x8x7xf32, #tpu.memory_space<vmem>>, vector<1x8x7xf32>,
    %193 = vector.broadcast %178 : vector<8x1xf32> to vector<8x32xf32>
    %194 = arith.cmpf ogt, %37, %193 : vector<8x32xf32>
    %195 = arith.andi %33, %194 : vector<8x32xi1>
    %cst_64 = arith.constant 1.000000e+09 : f32
    %196 = vector.broadcast %cst_64 : f32 to vector<8x32xf32>
    %197 = arith.select %195, %37, %196 : vector<8x32xi1>, vector<8x32xf32>
    %cst_65 = arith.constant dense<0x7F800000> : vector<8xf32>
    %198 = vector.multi_reduction <minimumf>, %197, %cst_65 [1] : vector<8x32xf32> to vector<8xf32>
    %199 = vector.shape_cast %198 : vector<8xf32> to vector<8x1xf32>
    %cst_66 = arith.constant 1.000000e+09 : f32
    %cst_67 = arith.constant 5.000000e-01 : f32
    %200 = arith.mulf %cst_66, %cst_67 : f32
    %201 = vector.broadcast %200 : f32 to vector<8x1xf32>
    %202 = arith.cmpf olt, %199, %201 : vector<8x1xf32>
    %203 = arith.select %202, %199, %41 : vector<8x1xi1>, vector<8x1xf32>
    %cst_68 = arith.constant 0.000000e+00 : f32
    %204 = vector.broadcast %cst_68 : f32 to vector<8x1xf32>
    %205 = arith.select %44, %204, %203 : vector<8x1xi1>, vector<8x1xf32>
    %206 = arith.fptosi %205 : vector<8x1xf32> to vector<8x1xi32>
    %207 = arith.select %202, %199, %178 : vector<8x1xi1>, vector<8x1xf32>
    %208 = arith.addi %206, %5 : vector<8x1xi32>
    %209 = vector.broadcast %208 : vector<8x1xi32> to vector<8x32xi32>
    %210 = arith.cmpi eq, %34, %209 : vector<8x32xi32>
    %211 = arith.extui %210 : vector<8x32xi1> to vector<8x32xi32>
    %212 = arith.sitofp %211 : vector<8x32xi32> to vector<8x32xf32>
    %cst_69 = arith.constant dense<0.000000e+00> : vector<8x7xf32>
    %213 = tpu.matmul %212, %1, %cst_69 {dimension_numbers = #tpu.dot_dimension_numbers<[1], [0], [0], [1], [0, 0, 1, 1], [], []>} : vector<8x32xf32>, vector<32x7xf32>, vector<8x7xf32> -> vector<8x7xf32>
    %214 = arith.subf %213, %46 : vector<8x7xf32>
    %cst_70 = arith.constant 0.000000e+00 : f32
    %215 = vector.shape_cast %44 : vector<8x1xi1> to vector<8x1xi1>
    %216 = vector.broadcast %215 : vector<8x1xi1> to vector<8x7xi1>
    %217 = vector.broadcast %cst_70 : f32 to vector<8x7xf32>
    %218 = arith.select %216, %217, %214 : vector<8x7xi1>, vector<8x7xf32>
    %c5 = arith.constant 5 : index
    %c0_71 = arith.constant 0 : index
    %c0_72 = arith.constant 0 : index
    %219 = vector.load %arg7[%c5, %c0_71, %c0_72] : memref<8x8x7xf32, #tpu.memory_space<vmem>>, vector<1x8x7xf32>
    %220 = vector.shape_cast %219 : vector<1x8x7xf32> to vector<8x7xf32>
    %221 = vector.shape_cast %218 : vector<8x7xf32> to vector<1x8x7xf32>
    tpu.vector_store %arg7[%c5, %c0_71, %c0_72], %221 {strides = array<i32>} : memref<8x8x7xf32, #tpu.memory_space<vmem>>, vector<1x8x7xf32>,
    %222 = vector.broadcast %207 : vector<8x1xf32> to vector<8x32xf32>
    %223 = arith.cmpf ogt, %37, %222 : vector<8x32xf32>
    %224 = arith.andi %33, %223 : vector<8x32xi1>
    %cst_73 = arith.constant 1.000000e+09 : f32
    %225 = vector.broadcast %cst_73 : f32 to vector<8x32xf32>
    %226 = arith.select %224, %37, %225 : vector<8x32xi1>, vector<8x32xf32>
    %cst_74 = arith.constant dense<0x7F800000> : vector<8xf32>
    %227 = vector.multi_reduction <minimumf>, %226, %cst_74 [1] : vector<8x32xf32> to vector<8xf32>
    %228 = vector.shape_cast %227 : vector<8xf32> to vector<8x1xf32>
    %cst_75 = arith.constant 1.000000e+09 : f32
    %cst_76 = arith.constant 5.000000e-01 : f32
    %229 = arith.mulf %cst_75, %cst_76 : f32
    %230 = vector.broadcast %229 : f32 to vector<8x1xf32>
    %231 = arith.cmpf olt, %228, %230 : vector<8x1xf32>
    %232 = arith.select %231, %228, %41 : vector<8x1xi1>, vector<8x1xf32>
    %cst_77 = arith.constant 0.000000e+00 : f32
    %233 = vector.broadcast %cst_77 : f32 to vector<8x1xf32>
    %234 = arith.select %44, %233, %232 : vector<8x1xi1>, vector<8x1xf32>
    %235 = arith.fptosi %234 : vector<8x1xf32> to vector<8x1xi32>
    %236 = arith.select %231, %228, %207 : vector<8x1xi1>, vector<8x1xf32>
    %237 = arith.addi %235, %5 : vector<8x1xi32>
    %238 = vector.broadcast %237 : vector<8x1xi32> to vector<8x32xi32>
    %239 = arith.cmpi eq, %34, %238 : vector<8x32xi32>
    %240 = arith.extui %239 : vector<8x32xi1> to vector<8x32xi32>
    %241 = arith.sitofp %240 : vector<8x32xi32> to vector<8x32xf32>
    %cst_78 = arith.constant dense<0.000000e+00> : vector<8x7xf32>
    %242 = tpu.matmul %241, %1, %cst_78 {dimension_numbers = #tpu.dot_dimension_numbers<[1], [0], [0], [1], [0, 0, 1, 1], [], []>} : vector<8x32xf32>, vector<32x7xf32>, vector<8x7xf32> -> vector<8x7xf32>
    %243 = arith.subf %242, %46 : vector<8x7xf32>
    %cst_79 = arith.constant 0.000000e+00 : f32
    %244 = vector.shape_cast %44 : vector<8x1xi1> to vector<8x1xi1>
    %245 = vector.broadcast %244 : vector<8x1xi1> to vector<8x7xi1>
    %246 = vector.broadcast %cst_79 : f32 to vector<8x7xf32>
    %247 = arith.select %245, %246, %243 : vector<8x7xi1>, vector<8x7xf32>
    %c6 = arith.constant 6 : index
    %c0_80 = arith.constant 0 : index
    %c0_81 = arith.constant 0 : index
    %248 = vector.load %arg7[%c6, %c0_80, %c0_81] : memref<8x8x7xf32, #tpu.memory_space<vmem>>, vector<1x8x7xf32>
    %249 = vector.shape_cast %248 : vector<1x8x7xf32> to vector<8x7xf32>
    %250 = vector.shape_cast %247 : vector<8x7xf32> to vector<1x8x7xf32>
    tpu.vector_store %arg7[%c6, %c0_80, %c0_81], %250 {strides = array<i32>} : memref<8x8x7xf32, #tpu.memory_space<vmem>>, vector<1x8x7xf32>,
    %251 = vector.broadcast %236 : vector<8x1xf32> to vector<8x32xf32>
    %252 = arith.cmpf ogt, %37, %251 : vector<8x32xf32>
    %253 = arith.andi %33, %252 : vector<8x32xi1>
    %cst_82 = arith.constant 1.000000e+09 : f32
    %254 = vector.broadcast %cst_82 : f32 to vector<8x32xf32>
    %255 = arith.select %253, %37, %254 : vector<8x32xi1>, vector<8x32xf32>
    %cst_83 = arith.constant dense<0x7F800000> : vector<8xf32>
    %256 = vector.multi_reduction <minimumf>, %255, %cst_83 [1] : vector<8x32xf32> to vector<8xf32>
    %257 = vector.shape_cast %256 : vector<8xf32> to vector<8x1xf32>
    %cst_84 = arith.constant 1.000000e+09 : f32
    %cst_85 = arith.constant 5.000000e-01 : f32
    %258 = arith.mulf %cst_84, %cst_85 : f32
    %259 = vector.broadcast %258 : f32 to vector<8x1xf32>
    %260 = arith.cmpf olt, %257, %259 : vector<8x1xf32>
    %261 = arith.select %260, %257, %41 : vector<8x1xi1>, vector<8x1xf32>
    %cst_86 = arith.constant 0.000000e+00 : f32
    %262 = vector.broadcast %cst_86 : f32 to vector<8x1xf32>
    %263 = arith.select %44, %262, %261 : vector<8x1xi1>, vector<8x1xf32>
    %264 = arith.fptosi %263 : vector<8x1xf32> to vector<8x1xi32>
    %265 = arith.addi %264, %5 : vector<8x1xi32>
    %266 = vector.broadcast %265 : vector<8x1xi32> to vector<8x32xi32>
    %267 = arith.cmpi eq, %34, %266 : vector<8x32xi32>
    %268 = arith.extui %267 : vector<8x32xi1> to vector<8x32xi32>
    %269 = arith.sitofp %268 : vector<8x32xi32> to vector<8x32xf32>
    %cst_87 = arith.constant dense<0.000000e+00> : vector<8x7xf32>
    %270 = tpu.matmul %269, %1, %cst_87 {dimension_numbers = #tpu.dot_dimension_numbers<[1], [0], [0], [1], [0, 0, 1, 1], [], []>} : vector<8x32xf32>, vector<32x7xf32>, vector<8x7xf32> -> vector<8x7xf32>
    %271 = arith.subf %270, %46 : vector<8x7xf32>
    %cst_88 = arith.constant 0.000000e+00 : f32
    %272 = vector.shape_cast %44 : vector<8x1xi1> to vector<8x1xi1>
    %273 = vector.broadcast %272 : vector<8x1xi1> to vector<8x7xi1>
    %274 = vector.broadcast %cst_88 : f32 to vector<8x7xf32>
    %275 = arith.select %273, %274, %271 : vector<8x7xi1>, vector<8x7xf32>
    %c7 = arith.constant 7 : index
    %c0_89 = arith.constant 0 : index
    %c0_90 = arith.constant 0 : index
    %276 = vector.load %arg7[%c7, %c0_89, %c0_90] : memref<8x8x7xf32, #tpu.memory_space<vmem>>, vector<1x8x7xf32>
    %277 = vector.shape_cast %276 : vector<1x8x7xf32> to vector<8x7xf32>
    %278 = vector.shape_cast %275 : vector<8x7xf32> to vector<1x8x7xf32>
    tpu.vector_store %arg7[%c7, %c0_89, %c0_90], %278 {strides = array<i32>} : memref<8x8x7xf32, #tpu.memory_space<vmem>>, vector<1x8x7xf32>,
    %279 = tpu.concatenate %61, %90, %119, %148, %177, %206, %235, %264 in 1 : vector<8x1xi32>, vector<8x1xi32>, vector<8x1xi32>, vector<8x1xi32>, vector<8x1xi32>, vector<8x1xi32>, vector<8x1xi32>, vector<8x1xi32> -> vector<8x8xi32>
    %c0_91 = arith.constant 0 : index
    %c0_92 = arith.constant 0 : index
    %280 = vector.load %arg8[%c0_91, %c0_92] : memref<8x8xi32, #tpu.memory_space<vmem>>, vector<8x8xi32>
    tpu.vector_store %arg8[%c0_91, %c0_92], %279 {strides = array<i32>} : memref<8x8xi32, #tpu.memory_space<vmem>>, vector<8x8xi32>,
    return
  }
  func.func @transform_0(%arg0: i32) -> (i32, i32) {
    %c0_i32 = arith.constant 0 : i32
    %c0_i32_0 = arith.constant 0 : i32
    %c0_i32_1 = arith.constant 0 : i32
    return %c0_i32, %c0_i32_0 : i32, i32
  }
  func.func @transform_1(%arg0: i32) -> (i32, i32) {
    %c0_i32 = arith.constant 0 : i32
    %c0_i32_0 = arith.constant 0 : i32
    %c0_i32_1 = arith.constant 0 : i32
    return %c0_i32, %c0_i32_0 : i32, i32
  }
  func.func @transform_2(%arg0: i32) -> (i32, i32) {
    %c0_i32 = arith.constant 0 : i32
    %c0_i32_0 = arith.constant 0 : i32
    return %arg0, %c0_i32 : i32, i32
  }
  func.func @transform_3(%arg0: i32) -> (i32, i32) {
    %c0_i32 = arith.constant 0 : i32
    %c0_i32_0 = arith.constant 0 : i32
    %c0_i32_1 = arith.constant 0 : i32
    return %c0_i32, %c0_i32_0 : i32, i32
  }
  func.func @transform_4(%arg0: i32) -> (i32, i32) {
    %c0_i32 = arith.constant 0 : i32
    %c0_i32_0 = arith.constant 0 : i32
    return %arg0, %c0_i32 : i32, i32
  }
  func.func @transform_5(%arg0: i32) -> (i32, i32) {
    %c0_i32 = arith.constant 0 : i32
    %c0_i32_0 = arith.constant 0 : i32
    return %arg0, %c0_i32 : i32, i32
  }
  func.func @transform_6(%arg0: i32) -> (i32, i32, i32) {
    %c0_i32 = arith.constant 0 : i32
    %c0_i32_0 = arith.constant 0 : i32
    %c0_i32_1 = arith.constant 0 : i32
    return %c0_i32, %arg0, %c0_i32_0 : i32, i32, i32
  }
  func.func @transform_7(%arg0: i32) -> (i32, i32) {
    %c0_i32 = arith.constant 0 : i32
    %c0_i32_0 = arith.constant 0 : i32
    return %arg0, %c0_i32 : i32, i32
  }
}

</mosaic_0001>

<llo_original>
// kernel: tpu_custom_call.1
$region0: #{tpu_custom_call.1}
  #allocation0 [shape = 'u32[]', space=smem, size = 0x4, offset = 0x4, fixed_abs, tag = 'smem constant byte address 0x4 - core index']
  #allocation1 [shape = 'u32[144,128]{1,0:T(1,128)}', space=vmem, size = 0x12000, scoped, tag = 'internal scratch']
  %s0 = inlined_call_operand.vmem [shape: f32[3,32], index: 0, kind: input, shape index: {}]
  %s1 = inlined_call_operand.vmem [shape: f32[32,7], index: 1, kind: input, shape index: {}]
  %s2 = inlined_call_operand.vmem [shape: f32[16,3], index: 2, kind: input, shape index: {}]
  %s3 = inlined_call_operand.vmem [shape: s32[1,32], index: 3, kind: input, shape index: {}]
  %s4 = inlined_call_operand.vmem [shape: s32[16,1], index: 4, kind: input, shape index: {}]
  %s5 = inlined_call_operand.vmem [shape: s32[16,1], index: 5, kind: input, shape index: {}]
  %s6 = inlined_call_operand.vmem [shape: f32[8,16,7], index: 6, kind: output, shape index: {0}]
  %s7 = inlined_call_operand.vmem [shape: s32[16,8], index: 7, kind: output, shape index: {1}]
  %8 = xla_tuple %s6, %s7
  %s9 = sld [smem:[#allocation0]]
  $region99: #{tpu_custom_call.1} parent=0
    _
  %s11 = ssub.s32 1, %s9
  %s12 = scalar_select 0, %s11, %s9
  $region1: #{tpu_custom_call.1} parent=0
    #allocation2 [shape = 'u8[65536]{0}', space=vmem, size = 0x10000, scoped, tag = 'output window, operand 0']
    loop: start=0, step=1, limit=4
    $region2: #{tpu_custom_call.1} parent=1 // loop_pre_header
      _
    $region3: #{tpu_custom_call.1} parent=1 // loop_header
      %s14 = sphi 0, %s18
      %p15 = scmp.ge.s32.totalorder %s14, 4
      %s22 = sphi 0, %s22
      %s24 = sphi 0, %s22
      %s25 = sphi 0, %s24
      %s39 = sphi 0, %s25
      %s43 = sphi 0, %s43
      %s45 = sphi 0, %s43
      %s46 = sphi 0, %s45
      %s60 = sphi 0, %s46
      %s66 = sphi 0, %s68
      %s69 = sphi 0, %s66
      %s70 = sphi 0, %s69
      %s86 = sphi 0, %s70
      %s90 = sphi 0, %s90
      %s92 = sphi 0, %s90
      %s93 = sphi 0, %s92
      %s107 = sphi 0, %s93
      %s113 = sphi 0, %s115
      %s116 = sphi 0, %s113
      %s117 = sphi 0, %s116
      %s133 = sphi 0, %s117
      %s139 = sphi 0, %s141
      %s142 = sphi 0, %s139
      %s143 = sphi 0, %s142
      %s159 = sphi 0, %s143
      %s165 = sphi 0, %s167
      %s168 = sphi 0, %s165
      %s169 = sphi 0, %s168
      %s185 = sphi 0, %s169
      %s191 = sphi 0, %s193
      %s194 = sphi 0, %s191
      %s195 = sphi 0, %s194
      %s211 = sphi 0, %s195
    $region4: #{tpu_custom_call.1} parent=1 // loop_header_branch
      %17 = sbr.rel (%p15) target = $region8
    $region5: #{tpu_custom_call.1} parent=1 // loop_body
      %s19 = ssub.s32 %s14, 1
      %s20 = ssub.s32 %s14, 2
      %s21 = sadd.s32 %s14, 1
      %s23 = sadd.s32 %s22, 1
      %p26 = scmp.eq.s32.totalorder %s14, 1
      %p27 = scmp.ne.s32.totalorder %s22, %s24
      %p28 = scmp.eq.s32.totalorder %s14, 0
      %p29 = por %p27, %p28
      %p30 = scmp.ne.s32.totalorder %s22, %s24
      %p31 = scmp.eq.s32.totalorder %s19, 1
      %p32 = por %p30, %p31
      %p33 = scmp.ne.s32.totalorder %s24, %s25
      %p34 = scmp.eq.s32.totalorder %s19, 0
      %p35 = por %p33, %p34
      %p36 = scmp.ne.s32.totalorder %s24, %s25
      %p37 = scmp.eq.s32.totalorder %s20, 1
      %p38 = por %p36, %p37
      %p40 = scmp.ne.s32.totalorder %s25, %s39
      %p41 = scmp.eq.s32.totalorder %s20, 0
      %p42 = por %p40, %p41
      %s44 = sadd.s32 %s43, 1
      %p47 = scmp.eq.s32.totalorder %s14, 1
      %p48 = scmp.ne.s32.totalorder %s43, %s45
      %p49 = scmp.eq.s32.totalorder %s14, 0
      %p50 = por %p48, %p49
      %p51 = scmp.ne.s32.totalorder %s43, %s45
      %p52 = scmp.eq.s32.totalorder %s19, 1
      %p53 = por %p51, %p52
      %p54 = scmp.ne.s32.totalorder %s45, %s46
      %p55 = scmp.eq.s32.totalorder %s19, 0
      %p56 = por %p54, %p55
      %p57 = scmp.ne.s32.totalorder %s45, %s46
      %p58 = scmp.eq.s32.totalorder %s20, 1
      %p59 = por %p57, %p58
      %p61 = scmp.ne.s32.totalorder %s46, %s60
      %p62 = scmp.eq.s32.totalorder %s20, 0
      %p63 = por %p61, %p62
      %s64 = ssub.s32 %s14, %s21
      %p65 = scmp.eq.s32.totalorder %s64, 0
      %s67 = sadd.s32 %s66, 1
      %s68 = scalar_select %p65, %s66, %s67
      %p71 = pneg %p65
      %p72 = scmp.eq.s32.totalorder %s14, 1
      %p73 = por %p71, %p72
      %p74 = scmp.ne.s32.totalorder %s66, %s69
      %p75 = scmp.eq.s32.totalorder %s14, 0
      %p76 = por %p74, %p75
      %p77 = scmp.ne.s32.totalorder %s66, %s69
      %p78 = scmp.eq.s32.totalorder %s19, 1
      %p79 = por %p77, %p78
      %p80 = scmp.ne.s32.totalorder %s69, %s70
      %p81 = scmp.eq.s32.totalorder %s19, 0
      %p82 = por %p80, %p81
      %p83 = scmp.ne.s32.totalorder %s69, %s70
      %p84 = scmp.eq.s32.totalorder %s20, 1
      %p85 = por %p83, %p84
      %p87 = scmp.ne.s32.totalorder %s70, %s86
      %p88 = scmp.eq.s32.totalorder %s20, 0
      %p89 = por %p87, %p88
      %s91 = sadd.s32 %s90, 1
      %p94 = scmp.eq.s32.totalorder %s14, 1
      %p95 = scmp.ne.s32.totalorder %s90, %s92
      %p96 = scmp.eq.s32.totalorder %s14, 0
      %p97 = por %p95, %p96
      %p98 = scmp.ne.s32.totalorder %s90, %s92
      %p99 = scmp.eq.s32.totalorder %s19, 1
      %p100 = por %p98, %p99
      %p101 = scmp.ne.s32.totalorder %s92, %s93
      %p102 = scmp.eq.s32.totalorder %s19, 0
      %p103 = por %p101, %p102
      %p104 = scmp.ne.s32.totalorder %s92, %s93
      %p105 = scmp.eq.s32.totalorder %s20, 1
      %p106 = por %p104, %p105
      %p108 = scmp.ne.s32.totalorder %s93, %s107
      %p109 = scmp.eq.s32.totalorder %s20, 0
      %p110 = por %p108, %p109
      %s111 = ssub.s32 %s14, %s21
      %p112 = scmp.eq.s32.totalorder %s111, 0
      %s114 = sadd.s32 %s113, 1
      %s115 = scalar_select %p112, %s113, %s114
      %p118 = pneg %p112
      %p119 = scmp.eq.s32.totalorder %s14, 1
      %p120 = por %p118, %p119
      %p121 = scmp.ne.s32.totalorder %s113, %s116
      %p122 = scmp.eq.s32.totalorder %s14, 0
      %p123 = por %p121, %p122
      %p124 = scmp.ne.s32.totalorder %s113, %s116
      %p125 = scmp.eq.s32.totalorder %s19, 1
      %p126 = por %p124, %p125
      %p127 = scmp.ne.s32.totalorder %s116, %s117
      %p128 = scmp.eq.s32.totalorder %s19, 0
      %p129 = por %p127, %p128
      %p130 = scmp.ne.s32.totalorder %s116, %s117
      %p131 = scmp.eq.s32.totalorder %s20, 1
      %p132 = por %p130, %p131
      %p134 = scmp.ne.s32.totalorder %s117, %s133
      %p135 = scmp.eq.s32.totalorder %s20, 0
      %p136 = por %p134, %p135
      %s137 = ssub.s32 %s14, %s21
      %p138 = scmp.eq.s32.totalorder %s137, 0
      %s140 = sadd.s32 %s139, 1
      %s141 = scalar_select %p138, %s139, %s140
      %p144 = pneg %p138
      %p145 = scmp.eq.s32.totalorder %s14, 1
      %p146 = por %p144, %p145
      %p147 = scmp.ne.s32.totalorder %s139, %s142
      %p148 = scmp.eq.s32.totalorder %s14, 0
      %p149 = por %p147, %p148
      %p150 = scmp.ne.s32.totalorder %s139, %s142
      %p151 = scmp.eq.s32.totalorder %s19, 1
      %p152 = por %p150, %p151
      %p153 = scmp.ne.s32.totalorder %s142, %s143
      %p154 = scmp.eq.s32.totalorder %s19, 0
      %p155 = por %p153, %p154
      %p156 = scmp.ne.s32.totalorder %s142, %s143
      %p157 = scmp.eq.s32.totalorder %s20, 1
      %p158 = por %p156, %p157
      %p160 = scmp.ne.s32.totalorder %s143, %s159
      %p161 = scmp.eq.s32.totalorder %s20, 0
      %p162 = por %p160, %p161
      %s163 = ssub.s32 %s14, %s21
      %p164 = scmp.eq.s32.totalorder %s163, 0
      %s166 = sadd.s32 %s165, 1
      %s167 = scalar_select %p164, %s165, %s166
      %p170 = pneg %p164
      %p171 = scmp.eq.s32.totalorder %s14, 1
      %p172 = por %p170, %p171
      %p173 = scmp.ne.s32.totalorder %s165, %s168
      %p174 = scmp.eq.s32.totalorder %s14, 0
      %p175 = por %p173, %p174
      %p176 = scmp.ne.s32.totalorder %s165, %s168
      %p177 = scmp.eq.s32.totalorder %s19, 1
      %p178 = por %p176, %p177
      %p179 = scmp.ne.s32.totalorder %s168, %s169
      %p180 = scmp.eq.s32.totalorder %s19, 0
      %p181 = por %p179, %p180
      %p182 = scmp.ne.s32.totalorder %s168, %s169
      %p183 = scmp.eq.s32.totalorder %s20, 1
      %p184 = por %p182, %p183
      %p186 = scmp.ne.s32.totalorder %s169, %s185
      %p187 = scmp.eq.s32.totalorder %s20, 0
      %p188 = por %p186, %p187
      %s189 = ssub.s32 %s14, %s21
      %p190 = scmp.eq.s32.totalorder %s189, 0
      %s192 = sadd.s32 %s191, 1
      %s193 = scalar_select %p190, %s191, %s192
      %p196 = pneg %p190
      %p197 = scmp.eq.s32.totalorder %s14, 1
      %p198 = por %p196, %p197
      %p199 = scmp.ne.s32.totalorder %s191, %s194
      %p200 = scmp.eq.s32.totalorder %s14, 0
      %p201 = por %p199, %p200
      %p202 = scmp.ne.s32.totalorder %s191, %s194
      %p203 = scmp.eq.s32.totalorder %s19, 1
      %p204 = por %p202, %p203
      %p205 = scmp.ne.s32.totalorder %s194, %s195
      %p206 = scmp.eq.s32.totalorder %s19, 0
      %p207 = por %p205, %p206
      %p208 = scmp.ne.s32.totalorder %s194, %s195
      %p209 = scmp.eq.s32.totalorder %s20, 1
      %p210 = por %p208, %p209
      %p212 = scmp.ne.s32.totalorder %s195, %s211
      %p213 = scmp.eq.s32.totalorder %s20, 0
      %p214 = por %p212, %p213
      %p215 = scmp.le.s32.totalorder 1, %s14
      %p216 = scmp.lt.s32.totalorder %s14, 3
      %p217 = pnand %p215, %p216
      %p218 = pneg %p217
      // Predicated region
      $region9: #{tpu_custom_call.1} parent=5 // pred_check
        _
      $region10: #{tpu_custom_call.1} parent=5 // pred_check_branch
        %220 = sbr.rel (%p217) target = $region12
      $region11: #{tpu_custom_call.1} parent=5 // pred_region
        %s221 = ssub.s32 %s14, 1
        // Predicated region
        $region13: #{tpu_custom_call.1} parent=11 // pred_check
          %p222 = pneg %p35
        $region14: #{tpu_custom_call.1} parent=11 // pred_check_branch
          %224 = sbr.rel (%p222) target = $region16
        $region15: #{tpu_custom_call.1} parent=11 // pred_region
          _
        $region16: #{tpu_custom_call.1} parent=11 // pred_fallthru
          _
        // Predicated region
        $region17: #{tpu_custom_call.1} parent=11 // pred_check
          %p225 = pneg %p56
        $region18: #{tpu_custom_call.1} parent=11 // pred_check_branch
          %227 = sbr.rel (%p225) target = $region20
        $region19: #{tpu_custom_call.1} parent=11 // pred_region
          _
        $region20: #{tpu_custom_call.1} parent=11 // pred_fallthru
          _
        // Predicated region
        $region21: #{tpu_custom_call.1} parent=11 // pred_check
          %p228 = pneg %p103
        $region22: #{tpu_custom_call.1} parent=11 // pred_check_branch
          %230 = sbr.rel (%p228) target = $region24
        $region23: #{tpu_custom_call.1} parent=11 // pred_region
          _
        $region24: #{tpu_custom_call.1} parent=11 // pred_fallthru
          _
      $region12: #{tpu_custom_call.1} parent=5 // pred_fallthru
        _
      %p231 = scmp.lt.s32.totalorder %s14, 2
      // Predicated region
      $region25: #{tpu_custom_call.1} parent=5 // pred_check
        %p232 = pneg %p231
      $region26: #{tpu_custom_call.1} parent=5 // pred_check_branch
        %234 = sbr.rel (%p232) target = $region28
      $region27: #{tpu_custom_call.1} parent=5 // pred_region
        // Predicated region
        $region29: #{tpu_custom_call.1} parent=27 // pred_check
          %p235 = pneg %p76
        $region30: #{tpu_custom_call.1} parent=27 // pred_check_branch
          %237 = sbr.rel (%p235) target = $region32
        $region31: #{tpu_custom_call.1} parent=27 // pred_region
          %p238 = scmp.lt.s32.totalorder %s14, 1
          %s239 = scalar_select %p238, %s14, 1
          %s240 = smul.addr %s239, 8
          %s241 = scalar_lea.vmem %s2, %s240
        $region32: #{tpu_custom_call.1} parent=27 // pred_fallthru
          _
        // Predicated region
        $region33: #{tpu_custom_call.1} parent=27 // pred_check
          %p242 = pneg %p123
        $region34: #{tpu_custom_call.1} parent=27 // pred_check_branch
          %244 = sbr.rel (%p242) target = $region36
        $region35: #{tpu_custom_call.1} parent=27 // pred_region
          %p245 = scmp.lt.s32.totalorder %s14, 1
          %s246 = scalar_select %p245, %s14, 1
          %s247 = smul.addr %s246, 8
          %s248 = scalar_lea.vmem %s4, %s247
        $region36: #{tpu_custom_call.1} parent=27 // pred_fallthru
          _
        // Predicated region
        $region37: #{tpu_custom_call.1} parent=27 // pred_check
          %p249 = pneg %p149
        $region38: #{tpu_custom_call.1} parent=27 // pred_check_branch
          %251 = sbr.rel (%p249) target = $region40
        $region39: #{tpu_custom_call.1} parent=27 // pred_region
          %p252 = scmp.lt.s32.totalorder %s14, 1
          %s253 = scalar_select %p252, %s14, 1
          %s254 = smul.addr %s253, 8
          %s255 = scalar_lea.vmem %s5, %s254
        $region40: #{tpu_custom_call.1} parent=27 // pred_fallthru
          _
      $region28: #{tpu_custom_call.1} parent=5 // pred_fallthru
        _
      %p256 = scmp.le.s32.totalorder 1, %s14
      %p257 = scmp.lt.s32.totalorder %s14, 3
      %p258 = pnand %p256, %p257
      %p259 = pneg %p258
      // Predicated region
      $region41: #{tpu_custom_call.1} parent=5 // pred_check
        _
      $region42: #{tpu_custom_call.1} parent=5 // pred_check_branch
        %261 = sbr.rel (%p258) target = $region44
      $region43: #{tpu_custom_call.1} parent=5 // pred_region
        %s262 = ssub.s32 %s14, 1
        %p263 = pneg %p35
        %p264 = pneg %p32
        %p265 = pneg %p56
        %p266 = pneg %p53
        %p267 = scmp.lt.s32.totalorder %s19, 1
        %s268 = scalar_select %p267, %s19, 1
        %s269 = smul.addr %s268, 8
        %s270 = scalar_lea.vmem %s2, %s269
        %p271 = pneg %p82
        %p272 = pneg %p79
        %p273 = pneg %p103
        %p274 = pneg %p100
        %p275 = scmp.lt.s32.totalorder %s19, 1
        %s276 = scalar_select %p275, %s19, 1
        %s277 = smul.addr %s276, 8
        %s278 = scalar_lea.vmem %s4, %s277
        %p279 = pneg %p129
        %p280 = pneg %p126
        %p281 = scmp.lt.s32.totalorder %s19, 1
        %s282 = scalar_select %p281, %s19, 1
        %s283 = smul.addr %s282, 8
        %s284 = scalar_lea.vmem %s5, %s283
        %p285 = pneg %p155
        %p286 = pneg %p152
        %p287 = pneg %p181
        %p288 = pneg %p178
        %s289 = sand.u32 %s168, 1
        %s290 = sand.u32 %s168, 1
        %s291 = smul.addr %s290, 64
        %s292 = scalar_lea.vmem [#allocation2], %s291
        %p293 = pneg %p207
        %p294 = pneg %p204
        %p295 = scmp.lt.s32.totalorder %s19, 1
        %s296 = scalar_select %p295, %s19, 1
        %s297 = smul.addr %s296, 8
        %s298 = scalar_lea.vmem %s7, %s297
        %p299 = scmp.lt.s32.totalorder %s19, 1
        %s300 = scalar_select %p299, %s19, 1
        %s301 = smul.addr %s300, 8
        %s302 = scalar_lea.vmem %s2, %s301
        %p303 = scmp.lt.s32.totalorder %s19, 1
        %s304 = scalar_select %p303, %s19, 1
        %s305 = smul.addr %s304, 8
        %s306 = scalar_lea.vmem %s4, %s305
        %p307 = scmp.lt.s32.totalorder %s19, 1
        %s308 = scalar_select %p307, %s19, 1
        %s309 = smul.addr %s308, 8
        %s310 = scalar_lea.vmem %s5, %s309
        %p311 = scmp.lt.s32.totalorder %s19, 1
        %s312 = scalar_select %p311, %s19, 1
        %s313 = smul.addr %s312, 8
        %s314 = scalar_lea.vmem %s7, %s313
        %v315 = vld [vmem:[%s0] sm:$0x7]
        %v316 = vld [vmem:[%s1] sm:$0xff]
        %v317 = vld [vmem:[%s1 + $0x8] sm:$0xff]
        %v318 = vld [vmem:[%s1 + $0x10] sm:$0xff]
        %v319 = vld [vmem:[%s1 + $0x18] sm:$0xff]
        %v320 = vld [vmem:[%s302] sm:$0xff]
        %v321 = vld [vmem:[%s3] sm:$0x1]
        %v322 = vld [vmem:[%s306] sm:$0xff]
        %v323 = vld [vmem:[%s310] sm:$0xff]
        %325 = vset.pattern.permute.xlu0 0
        %326 = vperm.xlu0 %325, %v320
        %v327 = vpop.permute.xlu0 %326
        %v329 = vlaneseq
        %v330 = vshrl.u32 %v329, 7
        %v331 = vsub.s32 0, %v330
        %v332 = vrot.slane %v315, %v331
        %v333 = vsub.f32 %v327, %v332
        %v334 = vmul.f32 %v333, %v333
        %v335 = vadd.f32 %v334, 0.0
        %336 = vset.pattern.permute.xlu0 1
        %337 = vperm.xlu0 %336, %v320
        %v338 = vpop.permute.xlu0 %337
        %v340 = vlaneseq
        %v341 = vshrl.u32 %v340, 7
        %v342 = vsub.s32 1, %v341
        %v343 = vrot.slane %v315, %v342
        %v344 = vsub.f32 %v338, %v343
        %v345 = vmul.f32 %v344, %v344
        %v346 = vadd.f32 %v335, %v345
        %347 = vset.pattern.permute.xlu0 2
        %348 = vperm.xlu0 %347, %v320
        %v349 = vpop.permute.xlu0 %348
        %v351 = vlaneseq
        %v352 = vshrl.u32 %v351, 7
        %v353 = vsub.s32 2, %v352
        %v354 = vrot.slane %v315, %v353
        %v355 = vsub.f32 %v349, %v354
        %v356 = vmul.f32 %v355, %v355
        %v357 = vadd.f32 %v346, %v356
        %358 = vset.pattern.permute.xlu0 0
        %359 = vperm.xlu0 %358, %v322
        %v360 = vpop.permute.xlu0 %359
        %v361 = vlaneseq
        %v362 = vshrl.u32 %v361, 7
        %v363 = vsub.s32 0, %v362
        %v364 = vrot.slane %v321, %v363
        %vm365 = vcmp.eq.s32.totalorder %v360, %v364
        %vm366 = vcmp.lt.f32.partialorder %v357, 1.44
        %vm367 = vmand %vm365, %vm366
        %v368 = vlaneseq
        %v369 = vand.u32 %v368, 127
        %370 = vset.pattern.permute.xlu0 0
        %371 = vperm.xlu0 %370, %v323
        %v372 = vpop.permute.xlu0 %371
        %v373 = vsub.s32 %v369, %v372
        %v374 = vcvt.s32.f32 %v373
        %v375 = vsel %vm367, %v374, 1e+09
        %vm376 = vcmask 261120
        %v377 = vsel %vm376, %v375, inf
        %378 = vmin.xlane.f32.xlu0 %v377
        %v379 = vpop.xlane.xlu0 %378
        %vm380 = vcmp.ge.f32.partialorder %v379, 5e+08
        %vm381 = vcmask 23552
        %v382 = vsel %vm381, %v320, 0.0
        %vm383 = vcmp.gt.f32.partialorder %v374, -1.0
        %vm384 = vmand %vm367, %vm383
        %v385 = vsel %vm384, %v374, 1e+09
        %v386 = vsel %vm376, %v385, inf
        %387 = vmin.xlane.f32.xlu0 %v386
        %v388 = vpop.xlane.xlu0 %387
        %vm389 = vcmp.lt.f32.partialorder %v388, 5e+08
        %v390 = vsel %vm389, %v388, %v379
        %v391 = vsel %vm380, 0.0, %v390
        %v392 = vcvt.f32.s32.to.zero.pseudo %v391
        %v393 = vsel %vm389, %v388, -1.0
        %v394 = vadd.s32 %v392, %v323
        %395 = vset.pattern.permute.xlu0 0
        %396 = vperm.xlu0 %395, %v394
        %v397 = vpop.permute.xlu0 %396
        %vm398 = vcmp.eq.s32.totalorder %v369, %v397
        %v399 = vsel %vm398, 1, 0
        %v400 = vcvt.s32.f32 %v399
        %v402 = vsel %vm376, %v400, 0
        %404 = vmatprep.subr.mxu0 0.0
        %405 = vmatpush1.msra.mxu0 0.0
        %406 = vmatprep.subr.mxu0 0.0
        %407 = vmatpush1.msra.mxu0 0.0
        %408 = vmatprep.subr.mxu0 0.0
        %409 = vmatpush1.msra.mxu0 0.0
        %410 = vmatprep.subr.mxu0 0.0
        %411 = vmatpush1.msra.mxu0 0.0
        %412 = vmatprep.subr.mxu0 0.0
        %413 = vmatpush1.msra.mxu0 0.0
        %414 = vmatprep.subr.mxu0 0.0
        %415 = vmatpush1.msra.mxu0 0.0
        %416 = vmatprep.subr.mxu0 0.0
        %417 = vmatpush1.msra.mxu0 0.0
        %418 = vmatprep.subr.mxu0 0.0
        %419 = vmatpush1.msra.mxu0 0.0
        %420 = vmatprep.subr.mxu0 0.0
        %421 = vmatpush1.msra.mxu0 0.0
        %422 = vmatprep.subr.mxu0 0.0
        %423 = vmatpush1.msra.mxu0 0.0
        %424 = vmatprep.subr.mxu0 0.0
        %425 = vmatpush1.msra.mxu0 0.0
        %426 = vmatprep.subr.mxu0 0.0
        %427 = vmatpush1.msra.mxu0 0.0
        %428 = vmatprep.subr.mxu0 0.0
        %429 = vmatpush1.msra.mxu0 %v319
        %430 = vmatprep.subr.mxu0 0.0
        %431 = vmatpush1.msra.mxu0 %v318
        %432 = vmatprep.subr.mxu0 0.0
        %433 = vmatpush1.msra.mxu0 %v317
        %434 = vmatprep.subr.mxu0 0.0
        %435 = vmatpush1.msra.mxu0 %v316
        %436 = vmatprep.subr.mxu0 0.0
        %437 = vmatpush2.msra.mxu0 0.0
        %438 = vmatprep.subr.mxu0 0.0
        %439 = vmatpush2.msra.mxu0 0.0
        %440 = vmatprep.subr.mxu0 0.0
        %441 = vmatpush2.msra.mxu0 0.0
        %442 = vmatprep.subr.mxu0 0.0
        %443 = vmatpush2.msra.mxu0 0.0
        %444 = vmatprep.subr.mxu0 0.0
        %445 = vmatpush2.msra.mxu0 0.0
        %446 = vmatprep.subr.mxu0 0.0
        %447 = vmatpush2.msra.mxu0 0.0
        %448 = vmatprep.subr.mxu0 0.0
        %449 = vmatpush2.msra.mxu0 0.0
        %450 = vmatprep.subr.mxu0 0.0
        %451 = vmatpush2.msra.mxu0 0.0
        %452 = vmatprep.subr.mxu0 0.0
        %453 = vmatpush2.msra.mxu0 0.0
        %454 = vmatprep.subr.mxu0 0.0
        %455 = vmatpush2.msra.mxu0 0.0
        %456 = vmatprep.subr.mxu0 0.0
        %457 = vmatpush2.msra.mxu0 0.0
        %458 = vmatprep.subr.mxu0 0.0
        %459 = vmatpush2.msra.mxu0 0.0
        %460 = vmatprep.subr.mxu0 0.0
        %461 = vmatpush2.msra.mxu0 0.0
        %462 = vmatprep.subr.mxu0 0.0
        %463 = vmatpush2.msra.mxu0 0.0
        %464 = vmatprep.subr.mxu0 0.0
        %465 = vmatpush2.msra.mxu0 0.0
        %466 = vmatprep.subr.mxu0 0.0
        %467 = vmatpush2.msra.mxu0 0.0
        %468 = vmatprep.mubr.f32.mxu0 0.0
        %469 = vmatmul.mubr.f32.gmra.mxu0 %v402
        %v470 = vpop.f32.mrf.mxu0
        %v471 = vadd.f32 0.0, %v470
        %v472 = vpop.f32.mrf.mxu0
        %473 = vdwg.mxu0
        %v474 = vsub.f32 %v471, %v382
        %v475 = vsel %vm380, 1, 0
        %vm476 = vcmp.eq.s32.totalorder %v475, 1
        %v477 = vsel %vm476, 0.0, %v474
        %vm478 = vcmask 56320
        %479 = vst.msk [vmem:[%s292] sm:$0xff] %vm478, %v477
        %vm480 = vcmp.gt.f32.partialorder %v374, %v393
        %vm481 = vmand %vm367, %vm480
        %v482 = vsel %vm481, %v374, 1e+09
        %v483 = vsel %vm376, %v482, inf
        %484 = vmin.xlane.f32.xlu0 %v483
        %v485 = vpop.xlane.xlu0 %484
        %vm486 = vcmp.lt.f32.partialorder %v485, 5e+08
        %v487 = vsel %vm486, %v485, %v379
        %v488 = vsel %vm380, 0.0, %v487
        %v489 = vcvt.f32.s32.to.zero.pseudo %v488
        %v490 = vsel %vm486, %v485, %v393
        %v491 = vadd.s32 %v489, %v323
        %492 = vset.pattern.permute.xlu0 0
        %493 = vperm.xlu0 %492, %v491
        %v494 = vpop.permute.xlu0 %493
        %vm495 = vcmp.eq.s32.totalorder %v369, %v494
        %v496 = vsel %vm495, 1, 0
        %v497 = vcvt.s32.f32 %v496
        %v499 = vsel %vm376, %v497, 0
        %501 = vmatprep.subr.mxu0 0.0
        %502 = vmatpush1.msra.mxu0 0.0
        %503 = vmatprep.subr.mxu0 0.0
        %504 = vmatpush1.msra.mxu0 0.0
        %505 = vmatprep.subr.mxu0 0.0
        %506 = vmatpush1.msra.mxu0 0.0
        %507 = vmatprep.subr.mxu0 0.0
        %508 = vmatpush1.msra.mxu0 0.0
        %509 = vmatprep.subr.mxu0 0.0
        %510 = vmatpush1.msra.mxu0 0.0
        %511 = vmatprep.subr.mxu0 0.0
        %512 = vmatpush1.msra.mxu0 0.0
        %513 = vmatprep.subr.mxu0 0.0
        %514 = vmatpush1.msra.mxu0 0.0
        %515 = vmatprep.subr.mxu0 0.0
        %516 = vmatpush1.msra.mxu0 0.0
        %517 = vmatprep.subr.mxu0 0.0
        %518 = vmatpush1.msra.mxu0 0.0
        %519 = vmatprep.subr.mxu0 0.0
        %520 = vmatpush1.msra.mxu0 0.0
        %521 = vmatprep.subr.mxu0 0.0
        %522 = vmatpush1.msra.mxu0 0.0
        %523 = vmatprep.subr.mxu0 0.0
        %524 = vmatpush1.msra.mxu0 0.0
        %525 = vmatprep.subr.mxu0 0.0
        %526 = vmatpush1.msra.mxu0 %v319
        %527 = vmatprep.subr.mxu0 0.0
        %528 = vmatpush1.msra.mxu0 %v318
        %529 = vmatprep.subr.mxu0 0.0
        %530 = vmatpush1.msra.mxu0 %v317
        %531 = vmatprep.subr.mxu0 0.0
        %532 = vmatpush1.msra.mxu0 %v316
        %533 = vmatprep.subr.mxu0 0.0
        %534 = vmatpush2.msra.mxu0 0.0
        %535 = vmatprep.subr.mxu0 0.0
        %536 = vmatpush2.msra.mxu0 0.0
        %537 = vmatprep.subr.mxu0 0.0
        %538 = vmatpush2.msra.mxu0 0.0
        %539 = vmatprep.subr.mxu0 0.0
        %540 = vmatpush2.msra.mxu0 0.0
        %541 = vmatprep.subr.mxu0 0.0
        %542 = vmatpush2.msra.mxu0 0.0
        %543 = vmatprep.subr.mxu0 0.0
        %544 = vmatpush2.msra.mxu0 0.0
        %545 = vmatprep.subr.mxu0 0.0
        %546 = vmatpush2.msra.mxu0 0.0
        %547 = vmatprep.subr.mxu0 0.0
        %548 = vmatpush2.msra.mxu0 0.0
        %549 = vmatprep.subr.mxu0 0.0
        %550 = vmatpush2.msra.mxu0 0.0
        %551 = vmatprep.subr.mxu0 0.0
        %552 = vmatpush2.msra.mxu0 0.0
        %553 = vmatprep.subr.mxu0 0.0
        %554 = vmatpush2.msra.mxu0 0.0
        %555 = vmatprep.subr.mxu0 0.0
        %556 = vmatpush2.msra.mxu0 0.0
        %557 = vmatprep.subr.mxu0 0.0
        %558 = vmatpush2.msra.mxu0 0.0
        %559 = vmatprep.subr.mxu0 0.0
        %560 = vmatpush2.msra.mxu0 0.0
        %561 = vmatprep.subr.mxu0 0.0
        %562 = vmatpush2.msra.mxu0 0.0
        %563 = vmatprep.subr.mxu0 0.0
        %564 = vmatpush2.msra.mxu0 0.0
        %565 = vmatprep.mubr.f32.mxu0 0.0
        %566 = vmatmul.mubr.f32.gmra.mxu0 %v499
        %v567 = vpop.f32.mrf.mxu0
        %v568 = vadd.f32 0.0, %v567
        %v569 = vpop.f32.mrf.mxu0
        %570 = vdwg.mxu0
        %v571 = vsub.f32 %v568, %v382
        %v572 = vsel %vm476, 0.0, %v571
        %s573 = scalar_lea.vmem %s292, 8 [#allocation2]
        %574 = vst.msk [vmem:[%s573] sm:$0xff] %vm478, %v572
        %vm575 = vcmp.gt.f32.partialorder %v374, %v490
        %vm576 = vmand %vm367, %vm575
        %v577 = vsel %vm576, %v374, 1e+09
        %v578 = vsel %vm376, %v577, inf
        %579 = vmin.xlane.f32.xlu0 %v578
        %v580 = vpop.xlane.xlu0 %579
        %vm581 = vcmp.lt.f32.partialorder %v580, 5e+08
        %v582 = vsel %vm581, %v580, %v379
        %v583 = vsel %vm380, 0.0, %v582
        %v584 = vcvt.f32.s32.to.zero.pseudo %v583
        %v585 = vsel %vm581, %v580, %v490
        %v586 = vadd.s32 %v584, %v323
        %587 = vset.pattern.permute.xlu0 0
        %588 = vperm.xlu0 %587, %v586
        %v589 = vpop.permute.xlu0 %588
        %vm590 = vcmp.eq.s32.totalorder %v369, %v589
        %v591 = vsel %vm590, 1, 0
        %v592 = vcvt.s32.f32 %v591
        %v594 = vsel %vm376, %v592, 0
        %596 = vmatprep.subr.mxu0 0.0
        %597 = vmatpush1.msra.mxu0 0.0
        %598 = vmatprep.subr.mxu0 0.0
        %599 = vmatpush1.msra.mxu0 0.0
        %600 = vmatprep.subr.mxu0 0.0
        %601 = vmatpush1.msra.mxu0 0.0
        %602 = vmatprep.subr.mxu0 0.0
        %603 = vmatpush1.msra.mxu0 0.0
        %604 = vmatprep.subr.mxu0 0.0
        %605 = vmatpush1.msra.mxu0 0.0
        %606 = vmatprep.subr.mxu0 0.0
        %607 = vmatpush1.msra.mxu0 0.0
        %608 = vmatprep.subr.mxu0 0.0
        %609 = vmatpush1.msra.mxu0 0.0
        %610 = vmatprep.subr.mxu0 0.0
        %611 = vmatpush1.msra.mxu0 0.0
        %612 = vmatprep.subr.mxu0 0.0
        %613 = vmatpush1.msra.mxu0 0.0
        %614 = vmatprep.subr.mxu0 0.0
        %615 = vmatpush1.msra.mxu0 0.0
        %616 = vmatprep.subr.mxu0 0.0
        %617 = vmatpush1.msra.mxu0 0.0
        %618 = vmatprep.subr.mxu0 0.0
        %619 = vmatpush1.msra.mxu0 0.0
        %620 = vmatprep.subr.mxu0 0.0
        %621 = vmatpush1.msra.mxu0 %v319
        %622 = vmatprep.subr.mxu0 0.0
        %623 = vmatpush1.msra.mxu0 %v318
        %624 = vmatprep.subr.mxu0 0.0
        %625 = vmatpush1.msra.mxu0 %v317
        %626 = vmatprep.subr.mxu0 0.0
        %627 = vmatpush1.msra.mxu0 %v316
        %628 = vmatprep.subr.mxu0 0.0
        %629 = vmatpush2.msra.mxu0 0.0
        %630 = vmatprep.subr.mxu0 0.0
        %631 = vmatpush2.msra.mxu0 0.0
        %632 = vmatprep.subr.mxu0 0.0
        %633 = vmatpush2.msra.mxu0 0.0
        %634 = vmatprep.subr.mxu0 0.0
        %635 = vmatpush2.msra.mxu0 0.0
        %636 = vmatprep.subr.mxu0 0.0
        %637 = vmatpush2.msra.mxu0 0.0
        %638 = vmatprep.subr.mxu0 0.0
        %639 = vmatpush2.msra.mxu0 0.0
        %640 = vmatprep.subr.mxu0 0.0
        %641 = vmatpush2.msra.mxu0 0.0
        %642 = vmatprep.subr.mxu0 0.0
        %643 = vmatpush2.msra.mxu0 0.0
        %644 = vmatprep.subr.mxu0 0.0
        %645 = vmatpush2.msra.mxu0 0.0
        %646 = vmatprep.subr.mxu0 0.0
        %647 = vmatpush2.msra.mxu0 0.0
        %648 = vmatprep.subr.mxu0 0.0
        %649 = vmatpush2.msra.mxu0 0.0
        %650 = vmatprep.subr.mxu0 0.0
        %651 = vmatpush2.msra.mxu0 0.0
        %652 = vmatprep.subr.mxu0 0.0
        %653 = vmatpush2.msra.mxu0 0.0
        %654 = vmatprep.subr.mxu0 0.0
        %655 = vmatpush2.msra.mxu0 0.0
        %656 = vmatprep.subr.mxu0 0.0
        %657 = vmatpush2.msra.mxu0 0.0
        %658 = vmatprep.subr.mxu0 0.0
        %659 = vmatpush2.msra.mxu0 0.0
        %660 = vmatprep.mubr.f32.mxu0 0.0
        %661 = vmatmul.mubr.f32.gmra.mxu0 %v594
        %v662 = vpop.f32.mrf.mxu0
        %v663 = vadd.f32 0.0, %v662
        %v664 = vpop.f32.mrf.mxu0
        %665 = vdwg.mxu0
        %v666 = vsub.f32 %v663, %v382
        %v667 = vsel %vm476, 0.0, %v666
        %s668 = scalar_lea.vmem %s292, 16 [#allocation2]
        %669 = vst.msk [vmem:[%s668] sm:$0xff] %vm478, %v667
        %vm670 = vcmp.gt.f32.partialorder %v374, %v585
        %vm671 = vmand %vm367, %vm670
        %v672 = vsel %vm671, %v374, 1e+09
        %v673 = vsel %vm376, %v672, inf
        %674 = vmin.xlane.f32.xlu0 %v673
        %v675 = vpop.xlane.xlu0 %674
        %vm676 = vcmp.lt.f32.partialorder %v675, 5e+08
        %v677 = vsel %vm676, %v675, %v379
        %v678 = vsel %vm380, 0.0, %v677
        %v679 = vcvt.f32.s32.to.zero.pseudo %v678
        %v680 = vsel %vm676, %v675, %v585
        %v681 = vadd.s32 %v679, %v323
        %682 = vset.pattern.permute.xlu0 0
        %683 = vperm.xlu0 %682, %v681
        %v684 = vpop.permute.xlu0 %683
        %vm685 = vcmp.eq.s32.totalorder %v369, %v684
        %v686 = vsel %vm685, 1, 0
        %v687 = vcvt.s32.f32 %v686
        %v689 = vsel %vm376, %v687, 0
        %691 = vmatprep.subr.mxu0 0.0
        %692 = vmatpush1.msra.mxu0 0.0
        %693 = vmatprep.subr.mxu0 0.0
        %694 = vmatpush1.msra.mxu0 0.0
        %695 = vmatprep.subr.mxu0 0.0
        %696 = vmatpush1.msra.mxu0 0.0
        %697 = vmatprep.subr.mxu0 0.0
        %698 = vmatpush1.msra.mxu0 0.0
        %699 = vmatprep.subr.mxu0 0.0
        %700 = vmatpush1.msra.mxu0 0.0
        %701 = vmatprep.subr.mxu0 0.0
        %702 = vmatpush1.msra.mxu0 0.0
        %703 = vmatprep.subr.mxu0 0.0
        %704 = vmatpush1.msra.mxu0 0.0
        %705 = vmatprep.subr.mxu0 0.0
        %706 = vmatpush1.msra.mxu0 0.0
        %707 = vmatprep.subr.mxu0 0.0
        %708 = vmatpush1.msra.mxu0 0.0
        %709 = vmatprep.subr.mxu0 0.0
        %710 = vmatpush1.msra.mxu0 0.0
        %711 = vmatprep.subr.mxu0 0.0
        %712 = vmatpush1.msra.mxu0 0.0
        %713 = vmatprep.subr.mxu0 0.0
        %714 = vmatpush1.msra.mxu0 0.0
        %715 = vmatprep.subr.mxu0 0.0
        %716 = vmatpush1.msra.mxu0 %v319
        %717 = vmatprep.subr.mxu0 0.0
        %718 = vmatpush1.msra.mxu0 %v318
        %719 = vmatprep.subr.mxu0 0.0
        %720 = vmatpush1.msra.mxu0 %v317
        %721 = vmatprep.subr.mxu0 0.0
        %722 = vmatpush1.msra.mxu0 %v316
        %723 = vmatprep.subr.mxu0 0.0
        %724 = vmatpush2.msra.mxu0 0.0
        %725 = vmatprep.subr.mxu0 0.0
        %726 = vmatpush2.msra.mxu0 0.0
        %727 = vmatprep.subr.mxu0 0.0
        %728 = vmatpush2.msra.mxu0 0.0
        %729 = vmatprep.subr.mxu0 0.0
        %730 = vmatpush2.msra.mxu0 0.0
        %731 = vmatprep.subr.mxu0 0.0
        %732 = vmatpush2.msra.mxu0 0.0
        %733 = vmatprep.subr.mxu0 0.0
        %734 = vmatpush2.msra.mxu0 0.0
        %735 = vmatprep.subr.mxu0 0.0
        %736 = vmatpush2.msra.mxu0 0.0
        %737 = vmatprep.subr.mxu0 0.0
        %738 = vmatpush2.msra.mxu0 0.0
        %739 = vmatprep.subr.mxu0 0.0
        %740 = vmatpush2.msra.mxu0 0.0
        %741 = vmatprep.subr.mxu0 0.0
        %742 = vmatpush2.msra.mxu0 0.0
        %743 = vmatprep.subr.mxu0 0.0
        %744 = vmatpush2.msra.mxu0 0.0
        %745 = vmatprep.subr.mxu0 0.0
        %746 = vmatpush2.msra.mxu0 0.0
        %747 = vmatprep.subr.mxu0 0.0
        %748 = vmatpush2.msra.mxu0 0.0
        %749 = vmatprep.subr.mxu0 0.0
        %750 = vmatpush2.msra.mxu0 0.0
        %751 = vmatprep.subr.mxu0 0.0
        %752 = vmatpush2.msra.mxu0 0.0
        %753 = vmatprep.subr.mxu0 0.0
        %754 = vmatpush2.msra.mxu0 0.0
        %755 = vmatprep.mubr.f32.mxu0 0.0
        %756 = vmatmul.mubr.f32.gmra.mxu0 %v689
        %v757 = vpop.f32.mrf.mxu0
        %v758 = vadd.f32 0.0, %v757
        %v759 = vpop.f32.mrf.mxu0
        %760 = vdwg.mxu0
        %v761 = vsub.f32 %v758, %v382
        %v762 = vsel %vm476, 0.0, %v761
        %s763 = scalar_lea.vmem %s292, 24 [#allocation2]
        %764 = vst.msk [vmem:[%s763] sm:$0xff] %vm478, %v762
        %vm765 = vcmp.gt.f32.partialorder %v374, %v680
        %vm766 = vmand %vm367, %vm765
        %v767 = vsel %vm766, %v374, 1e+09
        %v768 = vsel %vm376, %v767, inf
        %769 = vmin.xlane.f32.xlu0 %v768
        %v770 = vpop.xlane.xlu0 %769
        %vm771 = vcmp.lt.f32.partialorder %v770, 5e+08
        %v772 = vsel %vm771, %v770, %v379
        %v773 = vsel %vm380, 0.0, %v772
        %v774 = vcvt.f32.s32.to.zero.pseudo %v773
        %v775 = vsel %vm771, %v770, %v680
        %v776 = vadd.s32 %v774, %v323
        %777 = vset.pattern.permute.xlu0 0
        %778 = vperm.xlu0 %777, %v776
        %v779 = vpop.permute.xlu0 %778
        %vm780 = vcmp.eq.s32.totalorder %v369, %v779
        %v781 = vsel %vm780, 1, 0
        %v782 = vcvt.s32.f32 %v781
        %v784 = vsel %vm376, %v782, 0
        %786 = vmatprep.subr.mxu0 0.0
        %787 = vmatpush1.msra.mxu0 0.0
        %788 = vmatprep.subr.mxu0 0.0
        %789 = vmatpush1.msra.mxu0 0.0
        %790 = vmatprep.subr.mxu0 0.0
        %791 = vmatpush1.msra.mxu0 0.0
        %792 = vmatprep.subr.mxu0 0.0
        %793 = vmatpush1.msra.mxu0 0.0
        %794 = vmatprep.subr.mxu0 0.0
        %795 = vmatpush1.msra.mxu0 0.0
        %796 = vmatprep.subr.mxu0 0.0
        %797 = vmatpush1.msra.mxu0 0.0
        %798 = vmatprep.subr.mxu0 0.0
        %799 = vmatpush1.msra.mxu0 0.0
        %800 = vmatprep.subr.mxu0 0.0
        %801 = vmatpush1.msra.mxu0 0.0
        %802 = vmatprep.subr.mxu0 0.0
        %803 = vmatpush1.msra.mxu0 0.0
        %804 = vmatprep.subr.mxu0 0.0
        %805 = vmatpush1.msra.mxu0 0.0
        %806 = vmatprep.subr.mxu0 0.0
        %807 = vmatpush1.msra.mxu0 0.0
        %808 = vmatprep.subr.mxu0 0.0
        %809 = vmatpush1.msra.mxu0 0.0
        %810 = vmatprep.subr.mxu0 0.0
        %811 = vmatpush1.msra.mxu0 %v319
        %812 = vmatprep.subr.mxu0 0.0
        %813 = vmatpush1.msra.mxu0 %v318
        %814 = vmatprep.subr.mxu0 0.0
        %815 = vmatpush1.msra.mxu0 %v317
        %816 = vmatprep.subr.mxu0 0.0
        %817 = vmatpush1.msra.mxu0 %v316
        %818 = vmatprep.subr.mxu0 0.0
        %819 = vmatpush2.msra.mxu0 0.0
        %820 = vmatprep.subr.mxu0 0.0
        %821 = vmatpush2.msra.mxu0 0.0
        %822 = vmatprep.subr.mxu0 0.0
        %823 = vmatpush2.msra.mxu0 0.0
        %824 = vmatprep.subr.mxu0 0.0
        %825 = vmatpush2.msra.mxu0 0.0
        %826 = vmatprep.subr.mxu0 0.0
        %827 = vmatpush2.msra.mxu0 0.0
        %828 = vmatprep.subr.mxu0 0.0
        %829 = vmatpush2.msra.mxu0 0.0
        %830 = vmatprep.subr.mxu0 0.0
        %831 = vmatpush2.msra.mxu0 0.0
        %832 = vmatprep.subr.mxu0 0.0
        %833 = vmatpush2.msra.mxu0 0.0
        %834 = vmatprep.subr.mxu0 0.0
        %835 = vmatpush2.msra.mxu0 0.0
        %836 = vmatprep.subr.mxu0 0.0
        %837 = vmatpush2.msra.mxu0 0.0
        %838 = vmatprep.subr.mxu0 0.0
        %839 = vmatpush2.msra.mxu0 0.0
        %840 = vmatprep.subr.mxu0 0.0
        %841 = vmatpush2.msra.mxu0 0.0
        %842 = vmatprep.subr.mxu0 0.0
        %843 = vmatpush2.msra.mxu0 0.0
        %844 = vmatprep.subr.mxu0 0.0
        %845 = vmatpush2.msra.mxu0 0.0
        %846 = vmatprep.subr.mxu0 0.0
        %847 = vmatpush2.msra.mxu0 0.0
        %848 = vmatprep.subr.mxu0 0.0
        %849 = vmatpush2.msra.mxu0 0.0
        %850 = vmatprep.mubr.f32.mxu0 0.0
        %851 = vmatmul.mubr.f32.gmra.mxu0 %v784
        %v852 = vpop.f32.mrf.mxu0
        %v853 = vadd.f32 0.0, %v852
        %v854 = vpop.f32.mrf.mxu0
        %855 = vdwg.mxu0
        %v856 = vsub.f32 %v853, %v382
        %v857 = vsel %vm476, 0.0, %v856
        %s858 = scalar_lea.vmem %s292, 32 [#allocation2]
        %859 = vst.msk [vmem:[%s858] sm:$0xff] %vm478, %v857
        %vm860 = vcmp.gt.f32.partialorder %v374, %v775
        %vm861 = vmand %vm367, %vm860
        %v862 = vsel %vm861, %v374, 1e+09
        %v863 = vsel %vm376, %v862, inf
        %864 = vmin.xlane.f32.xlu0 %v863
        %v865 = vpop.xlane.xlu0 %864
        %vm866 = vcmp.lt.f32.partialorder %v865, 5e+08
        %v867 = vsel %vm866, %v865, %v379
        %v868 = vsel %vm380, 0.0, %v867
        %v869 = vcvt.f32.s32.to.zero.pseudo %v868
        %v870 = vsel %vm866, %v865, %v775
        %v871 = vadd.s32 %v869, %v323
        %872 = vset.pattern.permute.xlu0 0
        %873 = vperm.xlu0 %872, %v871
        %v874 = vpop.permute.xlu0 %873
        %vm875 = vcmp.eq.s32.totalorder %v369, %v874
        %v876 = vsel %vm875, 1, 0
        %v877 = vcvt.s32.f32 %v876
        %v879 = vsel %vm376, %v877, 0
        %881 = vmatprep.subr.mxu0 0.0
        %882 = vmatpush1.msra.mxu0 0.0
        %883 = vmatprep.subr.mxu0 0.0
        %884 = vmatpush1.msra.mxu0 0.0
        %885 = vmatprep.subr.mxu0 0.0
        %886 = vmatpush1.msra.mxu0 0.0
        %887 = vmatprep.subr.mxu0 0.0
        %888 = vmatpush1.msra.mxu0 0.0
        %889 = vmatprep.subr.mxu0 0.0
        %890 = vmatpush1.msra.mxu0 0.0
        %891 = vmatprep.subr.mxu0 0.0
        %892 = vmatpush1.msra.mxu0 0.0
        %893 = vmatprep.subr.mxu0 0.0
        %894 = vmatpush1.msra.mxu0 0.0
        %895 = vmatprep.subr.mxu0 0.0
        %896 = vmatpush1.msra.mxu0 0.0
        %897 = vmatprep.subr.mxu0 0.0
        %898 = vmatpush1.msra.mxu0 0.0
        %899 = vmatprep.subr.mxu0 0.0
        %900 = vmatpush1.msra.mxu0 0.0
        %901 = vmatprep.subr.mxu0 0.0
        %902 = vmatpush1.msra.mxu0 0.0
        %903 = vmatprep.subr.mxu0 0.0
        %904 = vmatpush1.msra.mxu0 0.0
        %905 = vmatprep.subr.mxu0 0.0
        %906 = vmatpush1.msra.mxu0 %v319
        %907 = vmatprep.subr.mxu0 0.0
        %908 = vmatpush1.msra.mxu0 %v318
        %909 = vmatprep.subr.mxu0 0.0
        %910 = vmatpush1.msra.mxu0 %v317
        %911 = vmatprep.subr.mxu0 0.0
        %912 = vmatpush1.msra.mxu0 %v316
        %913 = vmatprep.subr.mxu0 0.0
        %914 = vmatpush2.msra.mxu0 0.0
        %915 = vmatprep.subr.mxu0 0.0
        %916 = vmatpush2.msra.mxu0 0.0
        %917 = vmatprep.subr.mxu0 0.0
        %918 = vmatpush2.msra.mxu0 0.0
        %919 = vmatprep.subr.mxu0 0.0
        %920 = vmatpush2.msra.mxu0 0.0
        %921 = vmatprep.subr.mxu0 0.0
        %922 = vmatpush2.msra.mxu0 0.0
        %923 = vmatprep.subr.mxu0 0.0
        %924 = vmatpush2.msra.mxu0 0.0
        %925 = vmatprep.subr.mxu0 0.0
        %926 = vmatpush2.msra.mxu0 0.0
        %927 = vmatprep.subr.mxu0 0.0
        %928 = vmatpush2.msra.mxu0 0.0
        %929 = vmatprep.subr.mxu0 0.0
        %930 = vmatpush2.msra.mxu0 0.0
        %931 = vmatprep.subr.mxu0 0.0
        %932 = vmatpush2.msra.mxu0 0.0
        %933 = vmatprep.subr.mxu0 0.0
        %934 = vmatpush2.msra.mxu0 0.0
        %935 = vmatprep.subr.mxu0 0.0
        %936 = vmatpush2.msra.mxu0 0.0
        %937 = vmatprep.subr.mxu0 0.0
        %938 = vmatpush2.msra.mxu0 0.0
        %939 = vmatprep.subr.mxu0 0.0
        %940 = vmatpush2.msra.mxu0 0.0
        %941 = vmatprep.subr.mxu0 0.0
        %942 = vmatpush2.msra.mxu0 0.0
        %943 = vmatprep.subr.mxu0 0.0
        %944 = vmatpush2.msra.mxu0 0.0
        %945 = vmatprep.mubr.f32.mxu0 0.0
        %946 = vmatmul.mubr.f32.gmra.mxu0 %v879
        %v947 = vpop.f32.mrf.mxu0
        %v948 = vadd.f32 0.0, %v947
        %v949 = vpop.f32.mrf.mxu0
        %950 = vdwg.mxu0
        %v951 = vsub.f32 %v948, %v382
        %v952 = vsel %vm476, 0.0, %v951
        %s953 = scalar_lea.vmem %s292, 40 [#allocation2]
        %954 = vst.msk [vmem:[%s953] sm:$0xff] %vm478, %v952
        %vm955 = vcmp.gt.f32.partialorder %v374, %v870
        %vm956 = vmand %vm367, %vm955
        %v957 = vsel %vm956, %v374, 1e+09
        %v958 = vsel %vm376, %v957, inf
        %959 = vmin.xlane.f32.xlu0 %v958
        %v960 = vpop.xlane.xlu0 %959
        %vm961 = vcmp.lt.f32.partialorder %v960, 5e+08
        %v962 = vsel %vm961, %v960, %v379
        %v963 = vsel %vm380, 0.0, %v962
        %v964 = vcvt.f32.s32.to.zero.pseudo %v963
        %v965 = vsel %vm961, %v960, %v870
        %v966 = vadd.s32 %v964, %v323
        %967 = vset.pattern.permute.xlu0 0
        %968 = vperm.xlu0 %967, %v966
        %v969 = vpop.permute.xlu0 %968
        %vm970 = vcmp.eq.s32.totalorder %v369, %v969
        %v971 = vsel %vm970, 1, 0
        %v972 = vcvt.s32.f32 %v971
        %v974 = vsel %vm376, %v972, 0
        %976 = vmatprep.subr.mxu0 0.0
        %977 = vmatpush1.msra.mxu0 0.0
        %978 = vmatprep.subr.mxu0 0.0
        %979 = vmatpush1.msra.mxu0 0.0
        %980 = vmatprep.subr.mxu0 0.0
        %981 = vmatpush1.msra.mxu0 0.0
        %982 = vmatprep.subr.mxu0 0.0
        %983 = vmatpush1.msra.mxu0 0.0
        %984 = vmatprep.subr.mxu0 0.0
        %985 = vmatpush1.msra.mxu0 0.0
        %986 = vmatprep.subr.mxu0 0.0
        %987 = vmatpush1.msra.mxu0 0.0
        %988 = vmatprep.subr.mxu0 0.0
        %989 = vmatpush1.msra.mxu0 0.0
        %990 = vmatprep.subr.mxu0 0.0
        %991 = vmatpush1.msra.mxu0 0.0
        %992 = vmatprep.subr.mxu0 0.0
        %993 = vmatpush1.msra.mxu0 0.0
        %994 = vmatprep.subr.mxu0 0.0
        %995 = vmatpush1.msra.mxu0 0.0
        %996 = vmatprep.subr.mxu0 0.0
        %997 = vmatpush1.msra.mxu0 0.0
        %998 = vmatprep.subr.mxu0 0.0
        %999 = vmatpush1.msra.mxu0 0.0
        %1000 = vmatprep.subr.mxu0 0.0
        %1001 = vmatpush1.msra.mxu0 %v319
        %1002 = vmatprep.subr.mxu0 0.0
        %1003 = vmatpush1.msra.mxu0 %v318
        %1004 = vmatprep.subr.mxu0 0.0
        %1005 = vmatpush1.msra.mxu0 %v317
        %1006 = vmatprep.subr.mxu0 0.0
        %1007 = vmatpush1.msra.mxu0 %v316
        %1008 = vmatprep.subr.mxu0 0.0
        %1009 = vmatpush2.msra.mxu0 0.0
        %1010 = vmatprep.subr.mxu0 0.0
        %1011 = vmatpush2.msra.mxu0 0.0
        %1012 = vmatprep.subr.mxu0 0.0
        %1013 = vmatpush2.msra.mxu0 0.0
        %1014 = vmatprep.subr.mxu0 0.0
        %1015 = vmatpush2.msra.mxu0 0.0
        %1016 = vmatprep.subr.mxu0 0.0
        %1017 = vmatpush2.msra.mxu0 0.0
        %1018 = vmatprep.subr.mxu0 0.0
        %1019 = vmatpush2.msra.mxu0 0.0
        %1020 = vmatprep.subr.mxu0 0.0
        %1021 = vmatpush2.msra.mxu0 0.0
        %1022 = vmatprep.subr.mxu0 0.0
        %1023 = vmatpush2.msra.mxu0 0.0
        %1024 = vmatprep.subr.mxu0 0.0
        %1025 = vmatpush2.msra.mxu0 0.0
        %1026 = vmatprep.subr.mxu0 0.0
        %1027 = vmatpush2.msra.mxu0 0.0
        %1028 = vmatprep.subr.mxu0 0.0
        %1029 = vmatpush2.msra.mxu0 0.0
        %1030 = vmatprep.subr.mxu0 0.0
        %1031 = vmatpush2.msra.mxu0 0.0
        %1032 = vmatprep.subr.mxu0 0.0
        %1033 = vmatpush2.msra.mxu0 0.0
        %1034 = vmatprep.subr.mxu0 0.0
        %1035 = vmatpush2.msra.mxu0 0.0
        %1036 = vmatprep.subr.mxu0 0.0
        %1037 = vmatpush2.msra.mxu0 0.0
        %1038 = vmatprep.subr.mxu0 0.0
        %1039 = vmatpush2.msra.mxu0 0.0
        %1040 = vmatprep.mubr.f32.mxu0 0.0
        %1041 = vmatmul.mubr.f32.gmra.mxu0 %v974
        %v1042 = vpop.f32.mrf.mxu0
        %v1043 = vadd.f32 0.0, %v1042
        %v1044 = vpop.f32.mrf.mxu0
        %1045 = vdwg.mxu0
        %v1046 = vsub.f32 %v1043, %v382
        %v1047 = vsel %vm476, 0.0, %v1046
        %s1048 = scalar_lea.vmem %s292, 48 [#allocation2]
        %1049 = vst.msk [vmem:[%s1048] sm:$0xff] %vm478, %v1047
        %vm1050 = vcmp.gt.f32.partialorder %v374, %v965
        %vm1051 = vmand %vm367, %vm1050
        %v1052 = vsel %vm1051, %v374, 1e+09
        %v1053 = vsel %vm376, %v1052, inf
        %1054 = vmin.xlane.f32.xlu0 %v1053
        %v1055 = vpop.xlane.xlu0 %1054
        %vm1056 = vcmp.lt.f32.partialorder %v1055, 5e+08
        %v1057 = vsel %vm1056, %v1055, %v379
        %v1058 = vsel %vm380, 0.0, %v1057
        %v1059 = vcvt.f32.s32.to.zero.pseudo %v1058
        %v1060 = vadd.s32 %v1059, %v323
        %1061 = vset.pattern.permute.xlu0 0
        %1062 = vperm.xlu0 %1061, %v1060
        %v1063 = vpop.permute.xlu0 %1062
        %vm1064 = vcmp.eq.s32.totalorder %v369, %v1063
        %v1065 = vsel %vm1064, 1, 0
        %v1066 = vcvt.s32.f32 %v1065
        %v1068 = vsel %vm376, %v1066, 0
        %1070 = vmatprep.subr.mxu0 0.0
        %1071 = vmatpush1.msra.mxu0 0.0
        %1072 = vmatprep.subr.mxu0 0.0
        %1073 = vmatpush1.msra.mxu0 0.0
        %1074 = vmatprep.subr.mxu0 0.0
        %1075 = vmatpush1.msra.mxu0 0.0
        %1076 = vmatprep.subr.mxu0 0.0
        %1077 = vmatpush1.msra.mxu0 0.0
        %1078 = vmatprep.subr.mxu0 0.0
        %1079 = vmatpush1.msra.mxu0 0.0
        %1080 = vmatprep.subr.mxu0 0.0
        %1081 = vmatpush1.msra.mxu0 0.0
        %1082 = vmatprep.subr.mxu0 0.0
        %1083 = vmatpush1.msra.mxu0 0.0
        %1084 = vmatprep.subr.mxu0 0.0
        %1085 = vmatpush1.msra.mxu0 0.0
        %1086 = vmatprep.subr.mxu0 0.0
        %1087 = vmatpush1.msra.mxu0 0.0
        %1088 = vmatprep.subr.mxu0 0.0
        %1089 = vmatpush1.msra.mxu0 0.0
        %1090 = vmatprep.subr.mxu0 0.0
        %1091 = vmatpush1.msra.mxu0 0.0
        %1092 = vmatprep.subr.mxu0 0.0
        %1093 = vmatpush1.msra.mxu0 0.0
        %1094 = vmatprep.subr.mxu0 0.0
        %1095 = vmatpush1.msra.mxu0 %v319
        %1096 = vmatprep.subr.mxu0 0.0
        %1097 = vmatpush1.msra.mxu0 %v318
        %1098 = vmatprep.subr.mxu0 0.0
        %1099 = vmatpush1.msra.mxu0 %v317
        %1100 = vmatprep.subr.mxu0 0.0
        %1101 = vmatpush1.msra.mxu0 %v316
        %1102 = vmatprep.subr.mxu0 0.0
        %1103 = vmatpush2.msra.mxu0 0.0
        %1104 = vmatprep.subr.mxu0 0.0
        %1105 = vmatpush2.msra.mxu0 0.0
        %1106 = vmatprep.subr.mxu0 0.0
        %1107 = vmatpush2.msra.mxu0 0.0
        %1108 = vmatprep.subr.mxu0 0.0
        %1109 = vmatpush2.msra.mxu0 0.0
        %1110 = vmatprep.subr.mxu0 0.0
        %1111 = vmatpush2.msra.mxu0 0.0
        %1112 = vmatprep.subr.mxu0 0.0
        %1113 = vmatpush2.msra.mxu0 0.0
        %1114 = vmatprep.subr.mxu0 0.0
        %1115 = vmatpush2.msra.mxu0 0.0
        %1116 = vmatprep.subr.mxu0 0.0
        %1117 = vmatpush2.msra.mxu0 0.0
        %1118 = vmatprep.subr.mxu0 0.0
        %1119 = vmatpush2.msra.mxu0 0.0
        %1120 = vmatprep.subr.mxu0 0.0
        %1121 = vmatpush2.msra.mxu0 0.0
        %1122 = vmatprep.subr.mxu0 0.0
        %1123 = vmatpush2.msra.mxu0 0.0
        %1124 = vmatprep.subr.mxu0 0.0
        %1125 = vmatpush2.msra.mxu0 0.0
        %1126 = vmatprep.subr.mxu0 0.0
        %1127 = vmatpush2.msra.mxu0 0.0
        %1128 = vmatprep.subr.mxu0 0.0
        %1129 = vmatpush2.msra.mxu0 0.0
        %1130 = vmatprep.subr.mxu0 0.0
        %1131 = vmatpush2.msra.mxu0 0.0
        %1132 = vmatprep.subr.mxu0 0.0
        %1133 = vmatpush2.msra.mxu0 0.0
        %1134 = vmatprep.mubr.f32.mxu0 0.0
        %1135 = vmatmul.mubr.f32.gmra.mxu0 %v1068
        %v1136 = vpop.f32.mrf.mxu0
        %v1137 = vadd.f32 0.0, %v1136
        %v1138 = vpop.f32.mrf.mxu0
        %1139 = vdwg.mxu0
        %v1140 = vsub.f32 %v1137, %v382
        %v1141 = vsel %vm476, 0.0, %v1140
        %s1142 = scalar_lea.vmem %s292, 56 [#allocation2]
        %1143 = vst.msk [vmem:[%s1142] sm:$0xff] %vm478, %v1141
        %vm1144 = vcmask 7168
        %v1145 = vsel %vm1144, %v392, %v489
        %vm1146 = vcmask 15360
        %v1147 = vsel %vm1146, %v1145, %v584
        %v1148 = vsel %vm381, %v1147, %v679
        %vm1149 = vcmask 31744
        %v1150 = vsel %vm1149, %v1148, %v774
        %vm1151 = vcmask 39936
        %v1152 = vsel %vm1151, %v1150, %v869
        %vm1153 = vcmask 48128
        %v1154 = vsel %vm1153, %v1152, %v964
        %v1155 = vsel %vm478, %v1154, %v1059
        %vm1156 = vcmask 64512
        %1157 = vst.msk [vmem:[%s314] sm:$0xff] %vm1156, %v1155
        %s1158 = sand.u32 %s168, 1
        %s1159 = sand.u32 %s168, 1
        %s1160 = smul.addr %s1159, 64
        %s1161 = scalar_lea.vmem [#allocation2], %s1160
        %p1162 = scmp.lt.s32.totalorder %s19, 1
        %s1163 = scalar_select %p1162, %s19, 1
        %s1164 = smul.addr %s1163, 8
        %s1165 = scalar_lea.vmem %s7, %s1164
        // Predicated region
        $region45: #{tpu_custom_call.1} parent=43 // pred_check
          %p1166 = pneg %p178
        $region46: #{tpu_custom_call.1} parent=43 // pred_check_branch
          %1168 = sbr.rel (%p1166) target = $region48
        $region47: #{tpu_custom_call.1} parent=43 // pred_region
          %s1169 = smul.addr %s19, 8
          %s1170 = scalar_lea.vmem %s6, %s1169
          // Predicated region
          $region49: #{tpu_custom_call.1} parent=47 // pred_check
            _
          $region50: #{tpu_custom_call.1} parent=47 // pred_check_branch
            %1172 = sbr.rel (0) target = $region52
          $region51: #{tpu_custom_call.1} parent=47 // pred_region
            // Predicated region
            $region53: #{tpu_custom_call.1} parent=51 // pred_check
              _
            $region54: #{tpu_custom_call.1} parent=51 // pred_check_branch
              %1174 = sbr.rel (0) target = $region56
            $region55: #{tpu_custom_call.1} parent=51 // pred_region
              // Predicated region
              $region68: #{tpu_custom_call.1} parent=55 // pred_check
                _
              $region69: #{tpu_custom_call.1} parent=55 // pred_check_branch
                %1204 = sbr.rel (0) target = $region71
              $region70: #{tpu_custom_call.1} parent=55 // pred_region
                loop: start=0, step=1, limit=1
                $region72: #{tpu_custom_call.1} parent=70 // loop_pre_header
                  _
                $region73: #{tpu_custom_call.1} parent=70 // loop_header
                  %s1206 = sphi 0, %s1210
                  %p1207 = scmp.ge.s32.totalorder %s1206, 1
                  %s1211 = sphi %s1161, %s1161
                  %s1212 = sphi %s1170, %s1170
                $region74: #{tpu_custom_call.1} parent=70 // loop_header_branch
                  %1209 = sbr.rel (%p1207) target = $region78
                $region75: #{tpu_custom_call.1} parent=70 // loop_body
                  %v1213 = vld [vmem:[%s1211] sm:$0xff]
                  %1214 = vst [vmem:[%s1212] sm:$0xff] %v1213
                  %v1215 = vld [vmem:[%s1211 + $0x8] sm:$0xff]
                  %1216 = vst [vmem:[%s1212 + $0x10] sm:$0xff] %v1215
                  %v1217 = vld [vmem:[%s1211 + $0x10] sm:$0xff]
                  %1218 = vst [vmem:[%s1212 + $0x20] sm:$0xff] %v1217
                  %v1219 = vld [vmem:[%s1211 + $0x18] sm:$0xff]
                  %1220 = vst [vmem:[%s1212 + $0x30] sm:$0xff] %v1219
                  %v1221 = vld [vmem:[%s1211 + $0x20] sm:$0xff]
                  %1222 = vst [vmem:[%s1212 + $0x40] sm:$0xff] %v1221
                  %v1223 = vld [vmem:[%s1211 + $0x28] sm:$0xff]
                  %1224 = vst [vmem:[%s1212 + $0x50] sm:$0xff] %v1223
                  %v1225 = vld [vmem:[%s1211 + $0x30] sm:$0xff]
                  %1226 = vst [vmem:[%s1212 + $0x60] sm:$0xff] %v1225
                  %v1227 = vld [vmem:[%s1211 + $0x38] sm:$0xff]
                  %1228 = vst [vmem:[%s1212 + $0x70] sm:$0xff] %v1227
                $region76: #{tpu_custom_call.1} parent=70 // loop_footer
                  %s1210 = sadd.s32 1, %s1206
                $region77: #{tpu_custom_call.1} parent=70 // loop_footer_branch
                  %1205 = sbr.rel target = $region73
                $region78: #{tpu_custom_call.1} parent=70 // loop_exit
                  _
              $region71: #{tpu_custom_call.1} parent=55 // pred_fallthru
                _
              // Predicated region
              $region79: #{tpu_custom_call.1} parent=55 // pred_check
                _
              $region80: #{tpu_custom_call.1} parent=55 // pred_check_branch
                %1230 = sbr.rel target = $region82
              $region81: #{tpu_custom_call.1} parent=55 // pred_region
                _
              $region82: #{tpu_custom_call.1} parent=55 // pred_fallthru
                _
            $region56: #{tpu_custom_call.1} parent=51 // pred_fallthru
              _
            // Predicated region
            $region57: #{tpu_custom_call.1} parent=51 // pred_check
              _
            $region58: #{tpu_custom_call.1} parent=51 // pred_check_branch
              %1176 = sbr.rel target = $region60
            $region59: #{tpu_custom_call.1} parent=51 // pred_region
              %s1178 = ssub.s32 256, 1
              loop: start=0, step=1, limit=1
              $region61: #{tpu_custom_call.1} parent=59 // loop_pre_header
                _
              $region62: #{tpu_custom_call.1} parent=59 // loop_header
                %s1180 = sphi 0, %s1184
                %p1181 = scmp.ge.s32.totalorder %s1180, 1
                %s1185 = sphi %s1161, %s1161
                %s1186 = sphi %s1170, %s1170
              $region63: #{tpu_custom_call.1} parent=59 // loop_header_branch
                %1183 = sbr.rel (%p1181) target = $region67
              $region64: #{tpu_custom_call.1} parent=59 // loop_body
                %v1187 = vld [vmem:[%s1185] sm:%s1178]
                %1188 = vst [vmem:[%s1186] sm:%s1178] %v1187
                %v1189 = vld [vmem:[%s1185 + $0x8] sm:%s1178]
                %1190 = vst [vmem:[%s1186 + $0x10] sm:%s1178] %v1189
                %v1191 = vld [vmem:[%s1185 + $0x10] sm:%s1178]
                %1192 = vst [vmem:[%s1186 + $0x20] sm:%s1178] %v1191
                %v1193 = vld [vmem:[%s1185 + $0x18] sm:%s1178]
                %1194 = vst [vmem:[%s1186 + $0x30] sm:%s1178] %v1193
                %v1195 = vld [vmem:[%s1185 + $0x20] sm:%s1178]
                %1196 = vst [vmem:[%s1186 + $0x40] sm:%s1178] %v1195
                %v1197 = vld [vmem:[%s1185 + $0x28] sm:%s1178]
                %1198 = vst [vmem:[%s1186 + $0x50] sm:%s1178] %v1197
                %v1199 = vld [vmem:[%s1185 + $0x30] sm:%s1178]
                %1200 = vst [vmem:[%s1186 + $0x60] sm:%s1178] %v1199
                %v1201 = vld [vmem:[%s1185 + $0x38] sm:%s1178]
                %1202 = vst [vmem:[%s1186 + $0x70] sm:%s1178] %v1201
              $region65: #{tpu_custom_call.1} parent=59 // loop_footer
                %s1184 = sadd.s32 1, %s1180
              $region66: #{tpu_custom_call.1} parent=59 // loop_footer_branch
                %1179 = sbr.rel target = $region62
              $region67: #{tpu_custom_call.1} parent=59 // loop_exit
                _
            $region60: #{tpu_custom_call.1} parent=51 // pred_fallthru
              _
          $region52: #{tpu_custom_call.1} parent=47 // pred_fallthru
            _
          %1231 = vnop
        $region48: #{tpu_custom_call.1} parent=43 // pred_fallthru
          _
        // Predicated region
        $region83: #{tpu_custom_call.1} parent=43 // pred_check
          %p1232 = pneg %p204
        $region84: #{tpu_custom_call.1} parent=43 // pred_check_branch
          %1234 = sbr.rel (%p1232) target = $region86
        $region85: #{tpu_custom_call.1} parent=43 // pred_region
          _
        $region86: #{tpu_custom_call.1} parent=43 // pred_fallthru
          _
      $region44: #{tpu_custom_call.1} parent=5 // pred_fallthru
        _
      %p1235 = scmp.le.s32.totalorder 2, %s14
      // Predicated region
      $region87: #{tpu_custom_call.1} parent=5 // pred_check
        %p1236 = pneg %p1235
      $region88: #{tpu_custom_call.1} parent=5 // pred_check_branch
        %1238 = sbr.rel (%p1236) target = $region90
      $region89: #{tpu_custom_call.1} parent=5 // pred_region
        %s1239 = ssub.s32 %s14, 2
        // Predicated region
        $region91: #{tpu_custom_call.1} parent=89 // pred_check
          %p1240 = pneg %p184
        $region92: #{tpu_custom_call.1} parent=89 // pred_check_branch
          %1242 = sbr.rel (%p1240) target = $region94
        $region93: #{tpu_custom_call.1} parent=89 // pred_region
          %s1243 = sand.u32 %s169, 1
          %s1244 = sand.u32 %s169, 1
          %s1245 = smul.addr %s1244, 64
          %s1246 = scalar_lea.vmem [#allocation2], %s1245
        $region94: #{tpu_custom_call.1} parent=89 // pred_fallthru
          _
        // Predicated region
        $region95: #{tpu_custom_call.1} parent=89 // pred_check
          %p1247 = pneg %p210
        $region96: #{tpu_custom_call.1} parent=89 // pred_check_branch
          %1249 = sbr.rel (%p1247) target = $region98
        $region97: #{tpu_custom_call.1} parent=89 // pred_region
          %p1250 = scmp.lt.s32.totalorder %s20, 1
          %s1251 = scalar_select %p1250, %s20, 1
          %s1252 = smul.addr %s1251, 8
          %s1253 = scalar_lea.vmem %s7, %s1252
        $region98: #{tpu_custom_call.1} parent=89 // pred_fallthru
          _
      $region90: #{tpu_custom_call.1} parent=5 // pred_fallthru
        _
    $region6: #{tpu_custom_call.1} parent=1 // loop_footer
      %s18 = sadd.s32 1, %s14
    $region7: #{tpu_custom_call.1} parent=1 // loop_footer_branch
      %13 = sbr.rel target = $region3
    $region8: #{tpu_custom_call.1} parent=1 // loop_exit
      _

</llo_original>
